<compile_context>
chip_gen: v7x
topology: tpu7x:2x2x1
jax: 0.10.0
libtpu: 0.0.40
codegen_flags: <defaults>
</compile_context>

<pallas_src>
import functools

import jax
import jax.numpy as jnp
import numpy as np
from jax import lax
from jax.experimental import pallas as pl
from jax.experimental.pallas import tpu as pltpu

TILE_M = 512  # M-tile size (lane axis of the lane-dense output); multiple of 128.


# ----------------------------------------------------------------------------
# Pallas kernels
# ----------------------------------------------------------------------------
def _matmul_kernel(w_ref, x_ref, b_ref, o_ref, *, apply_tanh):
    # w:(R,F) bf16, x:(F,Tm) bf16, b:(R,1) f32, o:(R,Tm) f32
    acc = jnp.dot(w_ref[...], x_ref[...], preferred_element_type=jnp.float32)
    acc = acc + b_ref[...]
    if apply_tanh:
        acc = jnp.tanh(acc)
    o_ref[...] = acc


def _matmul_stats_kernel(w_ref, x_ref, b_ref, o_ref, sum_ref, sq_ref, *,
                         m_total, tile_m):
    # Matmul + bias, plus per-row (per-channel) partial sum / sum-of-squares
    # over this M-tile so BatchNorm never re-reads the activation for stats.
    acc = jnp.dot(w_ref[...], x_ref[...], preferred_element_type=jnp.float32)
    acc = acc + b_ref[...]
    o_ref[...] = acc
    if m_total % tile_m != 0:  # mask out M-padding columns in the statistics
        col = (lax.broadcasted_iota(jnp.int32, acc.shape, 1)
               + pl.program_id(0) * tile_m)
        acc = jnp.where(col < m_total, acc, 0.0)
    sum_ref[0, :, :] = jnp.sum(acc, axis=1, keepdims=True)
    sq_ref[0, :, :] = jnp.sum(acc * acc, axis=1, keepdims=True)


def _scale_shift_relu_kernel(x_ref, s_ref, t_ref, o_ref):
    # BatchNorm apply with precomputed per-channel scale/shift, then ReLU.
    o_ref[...] = jnp.maximum(x_ref[...] * s_ref[...] + t_ref[...], 0.0)


# ----------------------------------------------------------------------------
# pallas_call wrappers
# ----------------------------------------------------------------------------
def _tiling(m, tile):
    if m <= tile:
        return m, m, 1
    m_pad = -(-m // tile) * tile
    return tile, m_pad, m_pad // tile


def conv_matmul_pallas(w_mat, cols_t, bias, *, apply_tanh=False,
                       with_stats=False, tile_m=TILE_M):
    """Lane-dense conv-as-matmul: out[R, M] = w_mat[R, F] @ cols_t[F, M] + bias.

    Gridded over M-tiles ("parallel").  If with_stats, also returns per-row
    sum and sum-of-squares over M (BatchNorm batch statistics epilogue).
    """
    r, f = w_mat.shape
    m = cols_t.shape[1]
    tile, m_pad, num_tiles = _tiling(m, tile_m)
    if m_pad != m:
        cols_t = jnp.pad(cols_t, ((0, 0), (0, m_pad - m)))

    w_bf = w_mat.astype(jnp.bfloat16)
    cols_bf = cols_t.astype(jnp.bfloat16)
    b2 = bias.reshape(r, 1).astype(jnp.float32)

    out_shape = [jax.ShapeDtypeStruct((r, m_pad), jnp.float32)]
    out_specs = [pl.BlockSpec((r, tile), lambda i: (0, i))]
    if with_stats:
        out_shape += [jax.ShapeDtypeStruct((num_tiles, r, 1), jnp.float32)] * 2
        out_specs += [pl.BlockSpec((1, r, 1), lambda i: (i, 0, 0))] * 2
        kernel = functools.partial(_matmul_stats_kernel, m_total=m, tile_m=tile)
    else:
        kernel = functools.partial(_matmul_kernel, apply_tanh=apply_tanh)

    cost = pl.CostEstimate(
        flops=2 * r * f * m_pad,
        transcendentals=r * m_pad if apply_tanh else 0,
        bytes_accessed=2 * (r * f + f * m_pad) + 4 * r * m_pad)

    res = pl.pallas_call(
        kernel,
        out_shape=tuple(out_shape),
        grid=(num_tiles,),
        in_specs=[
            pl.BlockSpec((r, f), lambda i: (0, 0)),      # weights: VMEM-resident
            pl.BlockSpec((f, tile), lambda i: (0, i)),   # cols: M-tiled
            pl.BlockSpec((r, 1), lambda i: (0, 0)),      # bias
        ],
        out_specs=tuple(out_specs),
        compiler_params=pltpu.CompilerParams(
            dimension_semantics=("parallel",),
            vmem_limit_bytes=32 * 1024 * 1024),
        cost_estimate=cost,
    )(w_bf, cols_bf, b2)

    if with_stats:
        out, s1, s2 = res
        return out[:, :m], jnp.sum(s1, axis=(0, 2)), jnp.sum(s2, axis=(0, 2))
    return res[0][:, :m]


def bn_relu_apply_pallas(x, scale, shift, *, tile_m=TILE_M):
    """y = relu(x * scale[c] + shift[c]) on a (C, M) activation, tiled over M."""
    c, m = x.shape
    tile, m_pad, num_tiles = _tiling(m, tile_m)
    if m_pad != m:
        x = jnp.pad(x, ((0, 0), (0, m_pad - m)))
    out = pl.pallas_call(
        _scale_shift_relu_kernel,
        out_shape=jax.ShapeDtypeStruct((c, m_pad), jnp.float32),
        grid=(num_tiles,),
        in_specs=[
            pl.BlockSpec((c, tile), lambda i: (0, i)),
            pl.BlockSpec((c, 1), lambda i: (0, 0)),
            pl.BlockSpec((c, 1), lambda i: (0, 0)),
        ],
        out_specs=pl.BlockSpec((c, tile), lambda i: (0, i)),
        compiler_params=pltpu.CompilerParams(
            dimension_semantics=("parallel",),
            vmem_limit_bytes=32 * 1024 * 1024),
        cost_estimate=pl.CostEstimate(flops=2 * c * m_pad, transcendentals=0,
                                      bytes_accessed=8 * c * m_pad),
    )(x.astype(jnp.float32), scale.reshape(c, 1).astype(jnp.float32),
      shift.reshape(c, 1).astype(jnp.float32))
    return out[:, :m]


# ----------------------------------------------------------------------------
# Glue: phase im2col, BN statistics -> scale/shift
# ----------------------------------------------------------------------------
def _batchnorm_scale_shift(sum_c, sq_c, count, gamma, beta, eps=1e-5):
    mean = sum_c / count
    var = jnp.maximum(sq_c / count - mean * mean, 0.0)
    scale = gamma * lax.rsqrt(var + eps)
    shift = beta - mean * scale
    return scale, shift


def _phase_cols(xpad, off_h, off_w, h, w):
    """im2col for one output-parity phase: xpad (Ci, N, H+2, W+2) -> (4*Ci, N*H*W),
    tap (dh, dw)-major / channel-minor, matching the phase weight layout."""
    taps = [xpad[:, :, off_h + dh:off_h + dh + h, off_w + dw:off_w + dw + w]
            for dh in (0, 1) for dw in (0, 1)]
    ci = xpad.shape[0]
    return jnp.stack(taps, axis=0).reshape(4 * ci, -1)


# ----------------------------------------------------------------------------
# DC_Generator: parameters + forward
# ----------------------------------------------------------------------------
def init_dc_generator_params(key, r_size, in_channels, ngf, m):
    """Deterministic synthetic params; shapes exactly as in DC_Generator.__init__."""
    layer_io = []
    cin = r_size
    for i in m[:0:-1]:
        layer_io.append((cin, ngf * i, False))
        cin = ngf * i
    layer_io.append((cin, in_channels, True))

    params = []
    for ci, co, final in layer_io:
        key, kw, kb = jax.random.split(key, 3)
        p = {"w": 0.02 * jax.random.normal(kw, (ci, co, 4, 4), jnp.float32),
             "b": 0.01 * jax.random.normal(kb, (co,), jnp.float32),
             "final": final}
        if not final:
            p["gamma"] = jnp.ones((co,), jnp.float32)   # PyTorch BN default init
            p["beta"] = jnp.zeros((co,), jnp.float32)
        params.append(p)
    return params


# Output parity -> conv-kernel taps used, for k=4, stride=2, padding=1
# (kh = 3 - phase - 2*dh).
_PHASE_KIDX = (np.array([3, 1]), np.array([2, 0]))


def prepare_params(params):
    """One-time weight prep: flip/phase-split/flatten to kernel layout (bf16)."""
    prep = []
    for idx, p in enumerate(params):
        w, b = p["w"], p["b"]
        ci, co, k, _ = w.shape
        d = {}
        if idx == 0:
            # stride-1 ConvT on a 1x1 input == plain matmul: (Co*K*K, Ci)
            d["w_mat"] = (jnp.transpose(w, (1, 2, 3, 0))
                          .reshape(co * k * k, ci).astype(jnp.bfloat16))
            d["b_vec"] = jnp.repeat(b, k * k).astype(jnp.float32)
        else:
            w_ph = []
            for ph in (0, 1):
                row = []
                for pw in (0, 1):
                    sub = w[:, :, _PHASE_KIDX[ph], :][:, :, :, _PHASE_KIDX[pw]]
                    row.append(jnp.transpose(sub, (1, 2, 3, 0))
                               .reshape(co, 4 * ci).astype(jnp.bfloat16))
                w_ph.append(row)
            d["w_ph"] = w_ph
            d["b_vec"] = b.astype(jnp.float32)
        if not p["final"]:
            d["gamma"] = p["gamma"].astype(jnp.float32)
            d["beta"] = p["beta"].astype(jnp.float32)
        prep.append(d)
    return prep


def dc_generator_forward_pallas(rand_vect, prep, r_size):
    n = rand_vect.size // r_size
    x0 = rand_vect.reshape(n, r_size)

    # ---- layer 0: ConvT(k=4, s=1, p=0) on a 1x1 input -> (Co, N, 4, 4) ----
    p0 = prep[0]
    out0, s1, s2 = conv_matmul_pallas(p0["w_mat"], x0.T.astype(jnp.float32),
                                      p0["b_vec"], with_stats=True)
    co = p0["gamma"].shape[0]
    # rows of out0 are (co, kh, kw); columns are n  ->  channel-major (C, N*H*W)
    act = out0.reshape(co, 16, n).transpose(0, 2, 1).reshape(co, n * 16)
    scale, shift = _batchnorm_scale_shift(s1.reshape(co, 16).sum(-1),
                                          s2.reshape(co, 16).sum(-1),
                                          n * 16, p0["gamma"], p0["beta"])
    act = bn_relu_apply_pallas(act, scale, shift)
    h = w = 4
    ci = co

    # ---- stride-2 layers: phase-decomposed ConvT(k=4, s=2, p=1) ----
    for li in range(1, len(prep)):
        p = prep[li]
        last = li == len(prep) - 1
        co = p["b_vec"].shape[0]
        xpad = jnp.pad(act.reshape(ci, n, h, w), ((0, 0), (0, 0), (1, 1), (1, 1)))
        s1_tot = s2_tot = 0.0
        phase = []
        for ph in (0, 1):
            row = []
            for pw in (0, 1):
                cols = _phase_cols(xpad, ph, pw, h, w)
                if last:
                    o = conv_matmul_pallas(p["w_ph"][ph][pw], cols, p["b_vec"],
                                           apply_tanh=True)
                else:
                    o, s1, s2 = conv_matmul_pallas(p["w_ph"][ph][pw], cols,
                                                   p["b_vec"], with_stats=True)
                    s1_tot = s1_tot + s1
                    s2_tot = s2_tot + s2
                row.append(o.reshape(co, n, h, w))
            phase.append(row)
        stacked = jnp.stack([jnp.stack(r, axis=0) for r in phase], axis=0)
        ho, wo = 2 * h, 2 * w
        if last:
            # interleave phases straight into NCHW (no extra full-tensor transpose)
            return stacked.transpose(3, 2, 4, 0, 5, 1).reshape(n, co, ho, wo)
        act = stacked.transpose(2, 3, 4, 0, 5, 1).reshape(co, n * ho * wo)
        scale, shift = _batchnorm_scale_shift(s1_tot, s2_tot, n * ho * wo,
                                              p["gamma"], p["beta"])
        act = bn_relu_apply_pallas(act, scale, shift)
        h, w, ci = ho, wo, co


# ----------------------------------------------------------------------------
# Pure-JAX reference (direct definition) for validation
# ----------------------------------------------------------------------------
def _conv_transpose_ref_nchw(x, w, b, stride, padding):
    n, ci, h, wd = x.shape
    co, k = w.shape[1], w.shape[2]
    ho = (h - 1) * stride - 2 * padding + k
    wo = (wd - 1) * stride - 2 * padding + k
    y = jnp.zeros((n, co, ho + 2 * padding, wo + 2 * padding), jnp.float32)
    for ih in range(h):
        for iw in range(wd):
            contrib = jnp.einsum("nc,cokl->nokl", x[:, :, ih, iw], w,
                                 precision=lax.Precision.HIGHEST)
            y = y.at[:, :, ih * stride:ih * stride + k,
                     iw * stride:iw * stride + k].add(contrib)
    y = y[:, :, padding:padding + ho, padding:padding + wo]
    return y + b[None, :, None, None]


def dc_generator_forward_ref(rand_vect, params, r_size):
    x = rand_vect.reshape(-1, r_size, 1, 1)
    n_layers = len(params)
    for i, p in enumerate(params):
        last = i == n_layers - 1
        stride = 1 if i == 0 else 2
        pad = 0 if i == 0 else 1
        x = _conv_transpose_ref_nchw(x, p["w"], p["b"], stride, pad)
        if last:
            x = jnp.tanh(x)
        else:
            mean = jnp.mean(x, axis=(0, 2, 3), keepdims=True)
            var = jnp.mean((x - mean) ** 2, axis=(0, 2, 3), keepdims=True)
            x = (x - mean) * lax.rsqrt(var + 1e-5)
            x = x * p["gamma"][None, :, None, None] + p["beta"][None, :, None, None]
            x = jnp.maximum(x, 0.0)
    return x


# ----------------------------------------------------------------------------
if __name__ == "__main__":
    # Small config: m=[1,2,4] -> layers r_size->ngf*4 (1x1->4x4), ->ngf*2 (8x8),
    # -> in_channels (16x16).
    r_size, in_channels, ngf, m = 32, 4, 8, [1, 2, 4]
    batch = 2

    key = jax.random.PRNGKey(0)
    key, k_in = jax.random.split(key)
    rand_vect = jax.random.normal(k_in, (batch, r_size), jnp.float32)

    params = init_dc_generator_params(key, r_size, in_channels, ngf, m)
    prep = prepare_params(params)   # one-time weight prep (phase split, bf16)

    fwd = jax.jit(lambda rv, pp: dc_generator_forward_pallas(rv, pp, r_size))
    out = jax.block_until_ready(fwd(rand_vect, prep))
    assert out.shape == (batch, in_channels, 16, 16), out.shape

    ref = jax.block_until_ready(dc_generator_forward_ref(rand_vect, params, r_size))
    err = float(jnp.max(jnp.abs(out - ref)))
    assert np.allclose(np.asarray(out), np.asarray(ref), atol=2e-2, rtol=2e-2), err

    # TODO(synk): BatchNorm running-stat buffer updates (training-mode side
    # effects) are not reproduced; they do not affect the forward output.
    print("KERNEL_OK")
</pallas_src>

<mosaic_0001>
module attributes {stable_mosaic.version = 11 : i64} {
  func.func @_matmul_stats_kernel(%arg0: i32, %arg1: memref<512x32xbf16, #tpu.memory_space<vmem>>, %arg2: memref<32x2xbf16, #tpu.memory_space<vmem>>, %arg3: memref<512x1xf32, #tpu.memory_space<vmem>>, %arg4: memref<512x2xf32, #tpu.memory_space<vmem>>, %arg5: memref<1x512x1xf32, #tpu.memory_space<vmem>>, %arg6: memref<1x512x1xf32, #tpu.memory_space<vmem>>) attributes {dimension_semantics = [#tpu.dimension_semantics<parallel>], iteration_bounds = array<i64: 1>, scalar_prefetch = 0 : i64, scratch_operands = 0 : i64, tpu.core_type = #tpu.core_type<tc>, window_params = [{pipeline_mode = #tpu.pipeline_mode<synchronous>, transform_indices = @transform_0, window_bounds = array<i64: 512, 32>}, {transform_indices = @transform_1, window_bounds = array<i64: 32, 2>}, {pipeline_mode = #tpu.pipeline_mode<synchronous>, transform_indices = @transform_2, window_bounds = array<i64: 512, 1>}, {transform_indices = @transform_3, window_bounds = array<i64: 512, 2>}, {transform_indices = @transform_4, window_bounds = array<i64: 1, 512, 1>}, {transform_indices = @transform_5, window_bounds = array<i64: 1, 512, 1>}]} {
    %c0 = arith.constant 0 : index
    %c0_0 = arith.constant 0 : index
    %0 = vector.load %arg1[%c0, %c0_0] : memref<512x32xbf16, #tpu.memory_space<vmem>>, vector<512x32xbf16>
    %c0_1 = arith.constant 0 : index
    %c0_2 = arith.constant 0 : index
    %1 = vector.load %arg2[%c0_1, %c0_2] : memref<32x2xbf16, #tpu.memory_space<vmem>>, vector<32x2xbf16>
    %cst = arith.constant dense<0.000000e+00> : vector<512x2xf32>
    %2 = tpu.matmul %0, %1, %cst {dimension_numbers = #tpu.dot_dimension_numbers<[1], [0], [0], [1], [0, 0, 1, 1], [], []>} : vector<512x32xbf16>, vector<32x2xbf16>, vector<512x2xf32> -> vector<512x2xf32>
    %c0_3 = arith.constant 0 : index
    %c0_4 = arith.constant 0 : index
    %3 = vector.load %arg3[%c0_3, %c0_4] : memref<512x1xf32, #tpu.memory_space<vmem>>, vector<512x1xf32>
    %4 = vector.broadcast %3 : vector<512x1xf32> to vector<512x2xf32>
    %5 = arith.addf %2, %4 : vector<512x2xf32>
    %c0_5 = arith.constant 0 : index
    %c0_6 = arith.constant 0 : index
    %6 = vector.load %arg4[%c0_5, %c0_6] : memref<512x2xf32, #tpu.memory_space<vmem>>, vector<512x2xf32>
    tpu.vector_store %arg4[%c0_5, %c0_6], %5 {strides = array<i32>} : memref<512x2xf32, #tpu.memory_space<vmem>>, vector<512x2xf32>,
    %cst_7 = arith.constant dense<0.000000e+00> : vector<512xf32>
    %7 = vector.multi_reduction <add>, %5, %cst_7 [1] : vector<512x2xf32> to vector<512xf32>
    %8 = vector.shape_cast %7 : vector<512xf32> to vector<512x1xf32>
    %c0_8 = arith.constant 0 : index
    %c0_9 = arith.constant 0 : index
    %c0_10 = arith.constant 0 : index
    %9 = vector.load %arg5[%c0_8, %c0_9, %c0_10] : memref<1x512x1xf32, #tpu.memory_space<vmem>>, vector<1x512x1xf32>
    %10 = vector.shape_cast %9 : vector<1x512x1xf32> to vector<512x1xf32>
    %11 = vector.shape_cast %8 : vector<512x1xf32> to vector<1x512x1xf32>
    tpu.vector_store %arg5[%c0_8, %c0_9, %c0_10], %11 {strides = array<i32>} : memref<1x512x1xf32, #tpu.memory_space<vmem>>, vector<1x512x1xf32>,
    %12 = arith.mulf %5, %5 : vector<512x2xf32>
    %cst_11 = arith.constant dense<0.000000e+00> : vector<512xf32>
    %13 = vector.multi_reduction <add>, %12, %cst_11 [1] : vector<512x2xf32> to vector<512xf32>
    %14 = vector.shape_cast %13 : vector<512xf32> to vector<512x1xf32>
    %c0_12 = arith.constant 0 : index
    %c0_13 = arith.constant 0 : index
    %c0_14 = arith.constant 0 : index
    %15 = vector.load %arg6[%c0_12, %c0_13, %c0_14] : memref<1x512x1xf32, #tpu.memory_space<vmem>>, vector<1x512x1xf32>
    %16 = vector.shape_cast %15 : vector<1x512x1xf32> to vector<512x1xf32>
    %17 = vector.shape_cast %14 : vector<512x1xf32> to vector<1x512x1xf32>
    tpu.vector_store %arg6[%c0_12, %c0_13, %c0_14], %17 {strides = array<i32>} : memref<1x512x1xf32, #tpu.memory_space<vmem>>, vector<1x512x1xf32>,
    return
  }
  func.func @transform_0(%arg0: i32) -> (i32, i32) {
    %c0_i32 = arith.constant 0 : i32
    %c0_i32_0 = arith.constant 0 : i32
    %c0_i32_1 = arith.constant 0 : i32
    return %c0_i32, %c0_i32_0 : i32, i32
  }
  func.func @transform_1(%arg0: i32) -> (i32, i32) {
    %c0_i32 = arith.constant 0 : i32
    %c0_i32_0 = arith.constant 0 : i32
    return %c0_i32, %arg0 : i32, i32
  }
  func.func @transform_2(%arg0: i32) -> (i32, i32) {
    %c0_i32 = arith.constant 0 : i32
    %c0_i32_0 = arith.constant 0 : i32
    %c0_i32_1 = arith.constant 0 : i32
    return %c0_i32, %c0_i32_0 : i32, i32
  }
  func.func @transform_3(%arg0: i32) -> (i32, i32) {
    %c0_i32 = arith.constant 0 : i32
    %c0_i32_0 = arith.constant 0 : i32
    return %c0_i32, %arg0 : i32, i32
  }
  func.func @transform_4(%arg0: i32) -> (i32, i32, i32) {
    %c0_i32 = arith.constant 0 : i32
    %c0_i32_0 = arith.constant 0 : i32
    %c0_i32_1 = arith.constant 0 : i32
    return %arg0, %c0_i32, %c0_i32_0 : i32, i32, i32
  }
  func.func @transform_5(%arg0: i32) -> (i32, i32, i32) {
    %c0_i32 = arith.constant 0 : i32
    %c0_i32_0 = arith.constant 0 : i32
    %c0_i32_1 = arith.constant 0 : i32
    return %arg0, %c0_i32, %c0_i32_0 : i32, i32, i32
  }
}

module attributes {stable_mosaic.version = 11 : i64} {
  func.func @_scale_shift_relu_kernel(%arg0: i32, %arg1: memref<32x32xf32, #tpu.memory_space<vmem>>, %arg2: memref<32x1xf32, #tpu.memory_space<vmem>>, %arg3: memref<32x1xf32, #tpu.memory_space<vmem>>, %arg4: memref<32x32xf32, #tpu.memory_space<vmem>>) attributes {dimension_semantics = [#tpu.dimension_semantics<parallel>], iteration_bounds = array<i64: 1>, scalar_prefetch = 0 : i64, scratch_operands = 0 : i64, tpu.core_type = #tpu.core_type<tc>, window_params = [{transform_indices = @transform_0, window_bounds = array<i64: 32, 32>}, {pipeline_mode = #tpu.pipeline_mode<synchronous>, transform_indices = @transform_1, window_bounds = array<i64: 32, 1>}, {pipeline_mode = #tpu.pipeline_mode<synchronous>, transform_indices = @transform_2, window_bounds = array<i64: 32, 1>}, {transform_indices = @transform_3, window_bounds = array<i64: 32, 32>}]} {
    %c0 = arith.constant 0 : index
    %c0_0 = arith.constant 0 : index
    %0 = vector.load %arg1[%c0, %c0_0] : memref<32x32xf32, #tpu.memory_space<vmem>>, vector<32x32xf32>
    %c0_1 = arith.constant 0 : index
    %c0_2 = arith.constant 0 : index
    %1 = vector.load %arg2[%c0_1, %c0_2] : memref<32x1xf32, #tpu.memory_space<vmem>>, vector<32x1xf32>
    %2 = vector.broadcast %1 : vector<32x1xf32> to vector<32x32xf32>
    %3 = arith.mulf %0, %2 : vector<32x32xf32>
    %c0_3 = arith.constant 0 : index
    %c0_4 = arith.constant 0 : index
    %4 = vector.load %arg3[%c0_3, %c0_4] : memref<32x1xf32, #tpu.memory_space<vmem>>, vector<32x1xf32>
    %5 = vector.broadcast %4 : vector<32x1xf32> to vector<32x32xf32>
    %6 = arith.addf %3, %5 : vector<32x32xf32>
    %cst = arith.constant 0.000000e+00 : f32
    %7 = vector.broadcast %cst : f32 to vector<32x32xf32>
    %8 = arith.maximumf %6, %7 : vector<32x32xf32>
    %c0_5 = arith.constant 0 : index
    %c0_6 = arith.constant 0 : index
    %9 = vector.load %arg4[%c0_5, %c0_6] : memref<32x32xf32, #tpu.memory_space<vmem>>, vector<32x32xf32>
    tpu.vector_store %arg4[%c0_5, %c0_6], %8 {strides = array<i32>} : memref<32x32xf32, #tpu.memory_space<vmem>>, vector<32x32xf32>,
    return
  }
  func.func @transform_0(%arg0: i32) -> (i32, i32) {
    %c0_i32 = arith.constant 0 : i32
    %c0_i32_0 = arith.constant 0 : i32
    return %c0_i32, %arg0 : i32, i32
  }
  func.func @transform_1(%arg0: i32) -> (i32, i32) {
    %c0_i32 = arith.constant 0 : i32
    %c0_i32_0 = arith.constant 0 : i32
    %c0_i32_1 = arith.constant 0 : i32
    return %c0_i32, %c0_i32_0 : i32, i32
  }
  func.func @transform_2(%arg0: i32) -> (i32, i32) {
    %c0_i32 = arith.constant 0 : i32
    %c0_i32_0 = arith.constant 0 : i32
    %c0_i32_1 = arith.constant 0 : i32
    return %c0_i32, %c0_i32_0 : i32, i32
  }
  func.func @transform_3(%arg0: i32) -> (i32, i32) {
    %c0_i32 = arith.constant 0 : i32
    %c0_i32_0 = arith.constant 0 : i32
    return %c0_i32, %arg0 : i32, i32
  }
}

module attributes {stable_mosaic.version = 11 : i64} {
  func.func @_matmul_stats_kernel(%arg0: i32, %arg1: memref<16x128xbf16, #tpu.memory_space<vmem>>, %arg2: memref<128x32xbf16, #tpu.memory_space<vmem>>, %arg3: memref<16x1xf32, #tpu.memory_space<vmem>>, %arg4: memref<16x32xf32, #tpu.memory_space<vmem>>, %arg5: memref<1x16x1xf32, #tpu.memory_space<vmem>>, %arg6: memref<1x16x1xf32, #tpu.memory_space<vmem>>) attributes {dimension_semantics = [#tpu.dimension_semantics<parallel>], iteration_bounds = array<i64: 1>, scalar_prefetch = 0 : i64, scratch_operands = 0 : i64, tpu.core_type = #tpu.core_type<tc>, window_params = [{pipeline_mode = #tpu.pipeline_mode<synchronous>, transform_indices = @transform_0, window_bounds = array<i64: 16, 128>}, {transform_indices = @transform_1, window_bounds = array<i64: 128, 32>}, {pipeline_mode = #tpu.pipeline_mode<synchronous>, transform_indices = @transform_2, window_bounds = array<i64: 16, 1>}, {transform_indices = @transform_3, window_bounds = array<i64: 16, 32>}, {transform_indices = @transform_4, window_bounds = array<i64: 1, 16, 1>}, {transform_indices = @transform_5, window_bounds = array<i64: 1, 16, 1>}]} {
    %c0 = arith.constant 0 : index
    %c0_0 = arith.constant 0 : index
    %0 = vector.load %arg1[%c0, %c0_0] : memref<16x128xbf16, #tpu.memory_space<vmem>>, vector<16x128xbf16>
    %c0_1 = arith.constant 0 : index
    %c0_2 = arith.constant 0 : index
    %1 = vector.load %arg2[%c0_1, %c0_2] : memref<128x32xbf16, #tpu.memory_space<vmem>>, vector<128x32xbf16>
    %cst = arith.constant dense<0.000000e+00> : vector<16x32xf32>
    %2 = tpu.matmul %0, %1, %cst {dimension_numbers = #tpu.dot_dimension_numbers<[1], [0], [0], [1], [0, 0, 1, 1], [], []>} : vector<16x128xbf16>, vector<128x32xbf16>, vector<16x32xf32> -> vector<16x32xf32>
    %c0_3 = arith.constant 0 : index
    %c0_4 = arith.constant 0 : index
    %3 = vector.load %arg3[%c0_3, %c0_4] : memref<16x1xf32, #tpu.memory_space<vmem>>, vector<16x1xf32>
    %4 = vector.broadcast %3 : vector<16x1xf32> to vector<16x32xf32>
    %5 = arith.addf %2, %4 : vector<16x32xf32>
    %c0_5 = arith.constant 0 : index
    %c0_6 = arith.constant 0 : index
    %6 = vector.load %arg4[%c0_5, %c0_6] : memref<16x32xf32, #tpu.memory_space<vmem>>, vector<16x32xf32>
    tpu.vector_store %arg4[%c0_5, %c0_6], %5 {strides = array<i32>} : memref<16x32xf32, #tpu.memory_space<vmem>>, vector<16x32xf32>,
    %cst_7 = arith.constant dense<0.000000e+00> : vector<16xf32>
    %7 = vector.multi_reduction <add>, %5, %cst_7 [1] : vector<16x32xf32> to vector<16xf32>
    %8 = vector.shape_cast %7 : vector<16xf32> to vector<16x1xf32>
    %c0_8 = arith.constant 0 : index
    %c0_9 = arith.constant 0 : index
    %c0_10 = arith.constant 0 : index
    %9 = vector.load %arg5[%c0_8, %c0_9, %c0_10] : memref<1x16x1xf32, #tpu.memory_space<vmem>>, vector<1x16x1xf32>
    %10 = vector.shape_cast %9 : vector<1x16x1xf32> to vector<16x1xf32>
    %11 = vector.shape_cast %8 : vector<16x1xf32> to vector<1x16x1xf32>
    tpu.vector_store %arg5[%c0_8, %c0_9, %c0_10], %11 {strides = array<i32>} : memref<1x16x1xf32, #tpu.memory_space<vmem>>, vector<1x16x1xf32>,
    %12 = arith.mulf %5, %5 : vector<16x32xf32>
    %cst_11 = arith.constant dense<0.000000e+00> : vector<16xf32>
    %13 = vector.multi_reduction <add>, %12, %cst_11 [1] : vector<16x32xf32> to vector<16xf32>
    %14 = vector.shape_cast %13 : vector<16xf32> to vector<16x1xf32>
    %c0_12 = arith.constant 0 : index
    %c0_13 = arith.constant 0 : index
    %c0_14 = arith.constant 0 : index
    %15 = vector.load %arg6[%c0_12, %c0_13, %c0_14] : memref<1x16x1xf32, #tpu.memory_space<vmem>>, vector<1x16x1xf32>
    %16 = vector.shape_cast %15 : vector<1x16x1xf32> to vector<16x1xf32>
    %17 = vector.shape_cast %14 : vector<16x1xf32> to vector<1x16x1xf32>
    tpu.vector_store %arg6[%c0_12, %c0_13, %c0_14], %17 {strides = array<i32>} : memref<1x16x1xf32, #tpu.memory_space<vmem>>, vector<1x16x1xf32>,
    return
  }
  func.func @transform_0(%arg0: i32) -> (i32, i32) {
    %c0_i32 = arith.constant 0 : i32
    %c0_i32_0 = arith.constant 0 : i32
    %c0_i32_1 = arith.constant 0 : i32
    return %c0_i32, %c0_i32_0 : i32, i32
  }
  func.func @transform_1(%arg0: i32) -> (i32, i32) {
    %c0_i32 = arith.constant 0 : i32
    %c0_i32_0 = arith.constant 0 : i32
    return %c0_i32, %arg0 : i32, i32
  }
  func.func @transform_2(%arg0: i32) -> (i32, i32) {
    %c0_i32 = arith.constant 0 : i32
    %c0_i32_0 = arith.constant 0 : i32
    %c0_i32_1 = arith.constant 0 : i32
    return %c0_i32, %c0_i32_0 : i32, i32
  }
  func.func @transform_3(%arg0: i32) -> (i32, i32) {
    %c0_i32 = arith.constant 0 : i32
    %c0_i32_0 = arith.constant 0 : i32
    return %c0_i32, %arg0 : i32, i32
  }
  func.func @transform_4(%arg0: i32) -> (i32, i32, i32) {
    %c0_i32 = arith.constant 0 : i32
    %c0_i32_0 = arith.constant 0 : i32
    %c0_i32_1 = arith.constant 0 : i32
    return %arg0, %c0_i32, %c0_i32_0 : i32, i32, i32
  }
  func.func @transform_5(%arg0: i32) -> (i32, i32, i32) {
    %c0_i32 = arith.constant 0 : i32
    %c0_i32_0 = arith.constant 0 : i32
    %c0_i32_1 = arith.constant 0 : i32
    return %arg0, %c0_i32, %c0_i32_0 : i32, i32, i32
  }
}

module attributes {stable_mosaic.version = 11 : i64} {
  func.func @_scale_shift_relu_kernel(%arg0: i32, %arg1: memref<16x128xf32, #tpu.memory_space<vmem>>, %arg2: memref<16x1xf32, #tpu.memory_space<vmem>>, %arg3: memref<16x1xf32, #tpu.memory_space<vmem>>, %arg4: memref<16x128xf32, #tpu.memory_space<vmem>>) attributes {dimension_semantics = [#tpu.dimension_semantics<parallel>], iteration_bounds = array<i64: 1>, scalar_prefetch = 0 : i64, scratch_operands = 0 : i64, tpu.core_type = #tpu.core_type<tc>, window_params = [{transform_indices = @transform_0, window_bounds = array<i64: 16, 128>}, {pipeline_mode = #tpu.pipeline_mode<synchronous>, transform_indices = @transform_1, window_bounds = array<i64: 16, 1>}, {pipeline_mode = #tpu.pipeline_mode<synchronous>, transform_indices = @transform_2, window_bounds = array<i64: 16, 1>}, {transform_indices = @transform_3, window_bounds = array<i64: 16, 128>}]} {
    %c0 = arith.constant 0 : index
    %c0_0 = arith.constant 0 : index
    %0 = vector.load %arg1[%c0, %c0_0] : memref<16x128xf32, #tpu.memory_space<vmem>>, vector<16x128xf32>
    %c0_1 = arith.constant 0 : index
    %c0_2 = arith.constant 0 : index
    %1 = vector.load %arg2[%c0_1, %c0_2] : memref<16x1xf32, #tpu.memory_space<vmem>>, vector<16x1xf32>
    %2 = vector.broadcast %1 : vector<16x1xf32> to vector<16x128xf32>
    %3 = arith.mulf %0, %2 : vector<16x128xf32>
    %c0_3 = arith.constant 0 : index
    %c0_4 = arith.constant 0 : index
    %4 = vector.load %arg3[%c0_3, %c0_4] : memref<16x1xf32, #tpu.memory_space<vmem>>, vector<16x1xf32>
    %5 = vector.broadcast %4 : vector<16x1xf32> to vector<16x128xf32>
    %6 = arith.addf %3, %5 : vector<16x128xf32>
    %cst = arith.constant 0.000000e+00 : f32
    %7 = vector.broadcast %cst : f32 to vector<16x128xf32>
    %8 = arith.maximumf %6, %7 : vector<16x128xf32>
    %c0_5 = arith.constant 0 : index
    %c0_6 = arith.constant 0 : index
    %9 = vector.load %arg4[%c0_5, %c0_6] : memref<16x128xf32, #tpu.memory_space<vmem>>, vector<16x128xf32>
    tpu.vector_store %arg4[%c0_5, %c0_6], %8 {strides = array<i32>} : memref<16x128xf32, #tpu.memory_space<vmem>>, vector<16x128xf32>,
    return
  }
  func.func @transform_0(%arg0: i32) -> (i32, i32) {
    %c0_i32 = arith.constant 0 : i32
    %c0_i32_0 = arith.constant 0 : i32
    return %c0_i32, %arg0 : i32, i32
  }
  func.func @transform_1(%arg0: i32) -> (i32, i32) {
    %c0_i32 = arith.constant 0 : i32
    %c0_i32_0 = arith.constant 0 : i32
    %c0_i32_1 = arith.constant 0 : i32
    return %c0_i32, %c0_i32_0 : i32, i32
  }
  func.func @transform_2(%arg0: i32) -> (i32, i32) {
    %c0_i32 = arith.constant 0 : i32
    %c0_i32_0 = arith.constant 0 : i32
    %c0_i32_1 = arith.constant 0 : i32
    return %c0_i32, %c0_i32_0 : i32, i32
  }
  func.func @transform_3(%arg0: i32) -> (i32, i32) {
    %c0_i32 = arith.constant 0 : i32
    %c0_i32_0 = arith.constant 0 : i32
    return %c0_i32, %arg0 : i32, i32
  }
}

module attributes {stable_mosaic.version = 11 : i64} {
  func.func @_matmul_kernel(%arg0: i32, %arg1: memref<4x64xbf16, #tpu.memory_space<vmem>>, %arg2: memref<64x128xbf16, #tpu.memory_space<vmem>>, %arg3: memref<4x1xf32, #tpu.memory_space<vmem>>, %arg4: memref<4x128xf32, #tpu.memory_space<vmem>>) attributes {dimension_semantics = [#tpu.dimension_semantics<parallel>], iteration_bounds = array<i64: 1>, scalar_prefetch = 0 : i64, scratch_operands = 0 : i64, tpu.core_type = #tpu.core_type<tc>, window_params = [{pipeline_mode = #tpu.pipeline_mode<synchronous>, transform_indices = @transform_0, window_bounds = array<i64: 4, 64>}, {transform_indices = @transform_1, window_bounds = array<i64: 64, 128>}, {pipeline_mode = #tpu.pipeline_mode<synchronous>, transform_indices = @transform_2, window_bounds = array<i64: 4, 1>}, {transform_indices = @transform_3, window_bounds = array<i64: 4, 128>}]} {
    %c0 = arith.constant 0 : index
    %c0_0 = arith.constant 0 : index
    %0 = vector.load %arg1[%c0, %c0_0] : memref<4x64xbf16, #tpu.memory_space<vmem>>, vector<4x64xbf16>
    %c0_1 = arith.constant 0 : index
    %c0_2 = arith.constant 0 : index
    %1 = vector.load %arg2[%c0_1, %c0_2] : memref<64x128xbf16, #tpu.memory_space<vmem>>, vector<64x128xbf16>
    %cst = arith.constant dense<0.000000e+00> : vector<4x128xf32>
    %2 = tpu.matmul %0, %1, %cst {dimension_numbers = #tpu.dot_dimension_numbers<[1], [0], [0], [1], [0, 0, 1, 1], [], []>} : vector<4x64xbf16>, vector<64x128xbf16>, vector<4x128xf32> -> vector<4x128xf32>
    %c0_3 = arith.constant 0 : index
    %c0_4 = arith.constant 0 : index
    %3 = vector.load %arg3[%c0_3, %c0_4] : memref<4x1xf32, #tpu.memory_space<vmem>>, vector<4x1xf32>
    %4 = vector.broadcast %3 : vector<4x1xf32> to vector<4x128xf32>
    %5 = arith.addf %2, %4 : vector<4x128xf32>
    %6 = math.tanh %5 : vector<4x128xf32>
    %c0_5 = arith.constant 0 : index
    %c0_6 = arith.constant 0 : index
    %7 = vector.load %arg4[%c0_5, %c0_6] : memref<4x128xf32, #tpu.memory_space<vmem>>, vector<4x128xf32>
    tpu.vector_store %arg4[%c0_5, %c0_6], %6 {strides = array<i32>} : memref<4x128xf32, #tpu.memory_space<vmem>>, vector<4x128xf32>,
    return
  }
  func.func @transform_0(%arg0: i32) -> (i32, i32) {
    %c0_i32 = arith.constant 0 : i32
    %c0_i32_0 = arith.constant 0 : i32
    %c0_i32_1 = arith.constant 0 : i32
    return %c0_i32, %c0_i32_0 : i32, i32
  }
  func.func @transform_1(%arg0: i32) -> (i32, i32) {
    %c0_i32 = arith.constant 0 : i32
    %c0_i32_0 = arith.constant 0 : i32
    return %c0_i32, %arg0 : i32, i32
  }
  func.func @transform_2(%arg0: i32) -> (i32, i32) {
    %c0_i32 = arith.constant 0 : i32
    %c0_i32_0 = arith.constant 0 : i32
    %c0_i32_1 = arith.constant 0 : i32
    return %c0_i32, %c0_i32_0 : i32, i32
  }
  func.func @transform_3(%arg0: i32) -> (i32, i32) {
    %c0_i32 = arith.constant 0 : i32
    %c0_i32_0 = arith.constant 0 : i32
    return %c0_i32, %arg0 : i32, i32
  }
}

</mosaic_0001>

<llo_original>
// kernel: _lambda_.12
$region0: #{_lambda_.12}
  #allocation0 [shape = 'u32[]', space=smem, size = 0x4, offset = 0x4, fixed_abs, tag = 'smem constant byte address 0x4 - core index']
  #allocation1 [shape = 'u32[144,128]{1,0:T(1,128)}', space=vmem, size = 0x12000, scoped, tag = 'internal scratch']
  %s0 = inlined_call_operand.vmem [shape: f32[32,32], index: 0, kind: input, shape index: {}]
  %s1 = inlined_call_operand.vmem [shape: f32[32,1], index: 1, kind: input, shape index: {}]
  %s2 = inlined_call_operand.vmem [shape: f32[32,1], index: 2, kind: input, shape index: {}]
  %s3 = inlined_call_operand.vmem [shape: f32[32,32], index: 3, kind: output, shape index: {}]
  %s4 = sld [smem:[#allocation0]]
  $region22: #{_lambda_.12} parent=0
    _
  %s6 = ssub.s32 1, %s4
  %s7 = scalar_select 0, %s6, %s4
  // Predicated region
  $region2: #{_lambda_.12} parent=0 // pred_check
    _
  $region3: #{_lambda_.12} parent=0 // pred_check_branch
    %9 = sbr.rel (0) target = $region5
  $region4: #{_lambda_.12} parent=0 // pred_region
    _
  $region5: #{_lambda_.12} parent=0 // pred_fallthru
    _
  // Predicated region
  $region6: #{_lambda_.12} parent=0 // pred_check
    _
  $region7: #{_lambda_.12} parent=0 // pred_check_branch
    %11 = sbr.rel (0) target = $region9
  $region8: #{_lambda_.12} parent=0 // pred_region
    _
  $region9: #{_lambda_.12} parent=0 // pred_fallthru
    _
  // Predicated region
  $region10: #{_lambda_.12} parent=0 // pred_check
    _
  $region11: #{_lambda_.12} parent=0 // pred_check_branch
    %13 = sbr.rel (0) target = $region13
  $region12: #{_lambda_.12} parent=0 // pred_region
    _
  $region13: #{_lambda_.12} parent=0 // pred_fallthru
    _
  %v14 = vld [vmem:[%s0] sm:$0xff]
  %v15 = vld [vmem:[%s0 + $0x8] sm:$0xff]
  %v16 = vld [vmem:[%s0 + $0x10] sm:$0xff]
  %v17 = vld [vmem:[%s0 + $0x18] sm:$0xff]
  %v18 = vld [vmem:[%s1] sm:$0xff]
  %v19 = vld [vmem:[%s1 + $0x8] sm:$0xff]
  %v20 = vld [vmem:[%s1 + $0x10] sm:$0xff]
  %v21 = vld [vmem:[%s1 + $0x18] sm:$0xff]
  %23 = vset.pattern.permute.xlu0 0
  %24 = vperm.xlu0 %23, %v18
  %v25 = vpop.permute.xlu0 %24
  %28 = vset.pattern.permute.xlu0 0
  %29 = vperm.xlu0 %28, %v19
  %v30 = vpop.permute.xlu0 %29
  %33 = vset.pattern.permute.xlu0 0
  %34 = vperm.xlu0 %33, %v20
  %v35 = vpop.permute.xlu0 %34
  %38 = vset.pattern.permute.xlu0 0
  %39 = vperm.xlu0 %38, %v21
  %v40 = vpop.permute.xlu0 %39
  %v42 = vmul.f32 %v14, %v25
  %v43 = vmul.f32 %v15, %v30
  %v44 = vmul.f32 %v16, %v35
  %v45 = vmul.f32 %v17, %v40
  %v46 = vld [vmem:[%s2] sm:$0xff]
  %v47 = vld [vmem:[%s2 + $0x8] sm:$0xff]
  %v48 = vld [vmem:[%s2 + $0x10] sm:$0xff]
  %v49 = vld [vmem:[%s2 + $0x18] sm:$0xff]
  %51 = vset.pattern.permute.xlu0 0
  %52 = vperm.xlu0 %51, %v46
  %v53 = vpop.permute.xlu0 %52
  %56 = vset.pattern.permute.xlu0 0
  %57 = vperm.xlu0 %56, %v47
  %v58 = vpop.permute.xlu0 %57
  %61 = vset.pattern.permute.xlu0 0
  %62 = vperm.xlu0 %61, %v48
  %v63 = vpop.permute.xlu0 %62
  %66 = vset.pattern.permute.xlu0 0
  %67 = vperm.xlu0 %66, %v49
  %v68 = vpop.permute.xlu0 %67
  %v70 = vadd.f32 %v42, %v53
  %v71 = vadd.f32 %v43, %v58
  %v72 = vadd.f32 %v44, %v63
  %v73 = vadd.f32 %v45, %v68
  %v74 = vmax.f32 %v70, 0.0
  %v75 = vmax.f32 %v71, 0.0
  %v76 = vmax.f32 %v72, 0.0
  %v77 = vmax.f32 %v73, 0.0
  %vm78 = vcmask 261120
  %79 = vst.msk [vmem:[%s3] sm:$0xff] %vm78, %v74
  %80 = vst.msk [vmem:[%s3 + $0x8] sm:$0xff] %vm78, %v75
  %81 = vst.msk [vmem:[%s3 + $0x10] sm:$0xff] %vm78, %v76
  %82 = vst.msk [vmem:[%s3 + $0x18] sm:$0xff] %vm78, %v77
  // Predicated region
  $region14: #{_lambda_.12} parent=0 // pred_check
    _
  $region15: #{_lambda_.12} parent=0 // pred_check_branch
    %84 = sbr.rel (0) target = $region17
  $region16: #{_lambda_.12} parent=0 // pred_region
    _
  $region17: #{_lambda_.12} parent=0 // pred_fallthru
    _
  // Predicated region
  $region18: #{_lambda_.12} parent=0 // pred_check
    _
  $region19: #{_lambda_.12} parent=0 // pred_check_branch
    %86 = sbr.rel (0) target = $region21
  $region20: #{_lambda_.12} parent=0 // pred_region
    _
  $region21: #{_lambda_.12} parent=0 // pred_fallthru
    _

// kernel: _lambda_.13
$region0: #{_lambda_.13}
  #allocation0 [shape = 'u32[]', space=smem, size = 0x4, offset = 0x4, fixed_abs, tag = 'smem constant byte address 0x4 - core index']
  #allocation1 [shape = 'u32[144,128]{1,0:T(1,128)}', space=vmem, size = 0x12000, scoped, tag = 'internal scratch']
  %s0 = inlined_call_operand.vmem [shape: bf16[16,128], index: 0, kind: input, shape index: {}]
  %s1 = inlined_call_operand.vmem [shape: bf16[128,32], index: 1, kind: input, shape index: {}]
  %s2 = inlined_call_operand.vmem [shape: f32[16,1], index: 2, kind: input, shape index: {}]
  %s3 = inlined_call_operand.vmem [shape: f32[16,32], index: 3, kind: output, shape index: {0}]
  %s4 = inlined_call_operand.vmem [shape: f32[1,16,1], index: 4, kind: output, shape index: {1}]
  %s5 = inlined_call_operand.vmem [shape: f32[1,16,1], index: 5, kind: output, shape index: {2}]
  %6 = xla_tuple %s3, %s4, %s5
  %s7 = sld [smem:[#allocation0]]
  $region38: #{_lambda_.13} parent=0
    _
  %s9 = ssub.s32 1, %s7
  %s10 = scalar_select 0, %s9, %s7
  // Predicated region
  $region2: #{_lambda_.13} parent=0 // pred_check
    _
  $region3: #{_lambda_.13} parent=0 // pred_check_branch
    %12 = sbr.rel (0) target = $region5
  $region4: #{_lambda_.13} parent=0 // pred_region
    _
  $region5: #{_lambda_.13} parent=0 // pred_fallthru
    _
  // Predicated region
  $region6: #{_lambda_.13} parent=0 // pred_check
    _
  $region7: #{_lambda_.13} parent=0 // pred_check_branch
    %14 = sbr.rel (0) target = $region9
  $region8: #{_lambda_.13} parent=0 // pred_region
    _
  $region9: #{_lambda_.13} parent=0 // pred_fallthru
    _
  // Predicated region
  $region10: #{_lambda_.13} parent=0 // pred_check
    _
  $region11: #{_lambda_.13} parent=0 // pred_check_branch
    %16 = sbr.rel (0) target = $region13
  $region12: #{_lambda_.13} parent=0 // pred_region
    _
  $region13: #{_lambda_.13} parent=0 // pred_fallthru
    _
  %v18 = vld [vmem:[%s0] sm:$0xf]
  %v19 = vld [vmem:[%s0 + $0x4] sm:$0xf]
  %v20 = vld [vmem:[%s1] sm:$0xf]
  %v21 = vld [vmem:[%s1 + $0x4] sm:$0xf]
  %v22 = vld [vmem:[%s1 + $0x8] sm:$0xf]
  %v23 = vld [vmem:[%s1 + $0xc] sm:$0xf]
  %v24 = vld [vmem:[%s1 + $0x10] sm:$0xf]
  %v25 = vld [vmem:[%s1 + $0x14] sm:$0xf]
  %v26 = vld [vmem:[%s1 + $0x18] sm:$0xf]
  %v27 = vld [vmem:[%s1 + $0x1c] sm:$0xf]
  %v28 = vld [vmem:[%s1 + $0x20] sm:$0xf]
  %v29 = vld [vmem:[%s1 + $0x24] sm:$0xf]
  %v30 = vld [vmem:[%s1 + $0x28] sm:$0xf]
  %v31 = vld [vmem:[%s1 + $0x2c] sm:$0xf]
  %v32 = vld [vmem:[%s1 + $0x30] sm:$0xf]
  %v33 = vld [vmem:[%s1 + $0x34] sm:$0xf]
  %v34 = vld [vmem:[%s1 + $0x38] sm:$0xf]
  %v35 = vld [vmem:[%s1 + $0x3c] sm:$0xf]
  %v36 = vld [vmem:[%s2] sm:$0xff]
  %v37 = vld [vmem:[%s2 + $0x8] sm:$0xff]
  %39 = vset.pattern.permute.xlu0 0
  %40 = vperm.xlu0 %39, %v36
  %v41 = vpop.permute.xlu0 %40
  %44 = vset.pattern.permute.xlu0 0
  %45 = vperm.xlu0 %44, %v37
  %v46 = vpop.permute.xlu0 %45
  %v50 = vunpack.c.l.b16 %v18
  %v51 = vunpack.c.l.b16 %v19
  %v52 = vpack.c.b16 %v51, %v50
  %v70 = vunpack.c.l.b16 %v20
  %v71 = vunpack.c.l.b16 %v21
  %v72 = vunpack.c.l.b16 %v22
  %v73 = vunpack.c.l.b16 %v23
  %v74 = vunpack.c.l.b16 %v24
  %v75 = vunpack.c.l.b16 %v25
  %v76 = vunpack.c.l.b16 %v26
  %v77 = vunpack.c.l.b16 %v27
  %v78 = vunpack.c.l.b16 %v28
  %v79 = vunpack.c.l.b16 %v29
  %v80 = vunpack.c.l.b16 %v30
  %v81 = vunpack.c.l.b16 %v31
  %v82 = vunpack.c.l.b16 %v32
  %v83 = vunpack.c.l.b16 %v33
  %v84 = vunpack.c.l.b16 %v34
  %v85 = vunpack.c.l.b16 %v35
  %v86 = vpack.c.b16 %v71, %v70
  %v87 = vpack.c.b16 %v73, %v72
  %v88 = vpack.c.b16 %v75, %v74
  %v89 = vpack.c.b16 %v77, %v76
  %v90 = vpack.c.b16 %v79, %v78
  %v91 = vpack.c.b16 %v81, %v80
  %v92 = vpack.c.b16 %v83, %v82
  %v93 = vpack.c.b16 %v85, %v84
  %102 = vmatprep.subr.bf16.mxu0 0
  %103 = vmatpush1.bf16.msra.mxu0 %v86
  %104 = vmatprep.subr.bf16.mxu0 0
  %105 = vmatpush1.bf16.msra.mxu0 %v87
  %106 = vmatprep.subr.bf16.mxu0 0
  %107 = vmatpush1.bf16.msra.mxu0 %v88
  %108 = vmatprep.subr.bf16.mxu0 0
  %109 = vmatpush1.bf16.msra.mxu0 %v89
  %110 = vmatprep.subr.bf16.mxu0 0
  %111 = vmatpush1.bf16.msra.mxu0 %v90
  %112 = vmatprep.subr.bf16.mxu0 0
  %113 = vmatpush1.bf16.msra.mxu0 %v91
  %114 = vmatprep.subr.bf16.mxu0 0
  %115 = vmatpush1.bf16.msra.mxu0 %v92
  %116 = vmatprep.subr.bf16.mxu0 0
  %117 = vmatpush1.bf16.msra.mxu0 %v93
  %118 = vmatprep.subr.bf16.mxu0 0
  %119 = vmatpush1.bf16.msra.mxu0 0
  %120 = vmatprep.subr.bf16.mxu0 0
  %121 = vmatpush1.bf16.msra.mxu0 0
  %122 = vmatprep.subr.bf16.mxu0 0
  %123 = vmatpush1.bf16.msra.mxu0 0
  %124 = vmatprep.subr.bf16.mxu0 0
  %125 = vmatpush1.bf16.msra.mxu0 0
  %126 = vmatprep.subr.bf16.mxu0 0
  %127 = vmatpush1.bf16.msra.mxu0 0
  %128 = vmatprep.subr.bf16.mxu0 0
  %129 = vmatpush1.bf16.msra.mxu0 0
  %130 = vmatprep.subr.bf16.mxu0 0
  %131 = vmatpush1.bf16.msra.mxu0 0
  %132 = vmatprep.subr.bf16.mxu0 0
  %133 = vmatpush1.bf16.msra.mxu0 0
  %134 = vmatprep.mubr.bf16.mxu0 0
  %135 = vmatmul.mubr.bf16.gmra.mrb[0].mxu0 %v52
  %v136 = vpop.f32.mrb[0].mxu0
  %v137 = vadd.f32 %v41, %v136
  %v138 = vpop.f32.mrb[0].mxu0
  %v139 = vpop.f32.mrb[0].mxu0
  %v140 = vadd.f32 %v46, %v139
  %v141 = vpop.f32.mrb[0].mxu0
  %142 = vdwg.mxu0
  %vm143 = vcmask 261120
  %144 = vst.msk [vmem:[%s3] sm:$0xff] %vm143, %v137
  %145 = vst.msk [vmem:[%s3 + $0x8] sm:$0xff] %vm143, %v140
  %v146 = vsel %vm143, %v137, 0.0
  %147 = vadd.xlane.f32.xlu0 %v146
  %v148 = vpop.xlane.xlu0 %147
  %v149 = vsel %vm143, %v140, 0.0
  %150 = vadd.xlane.f32.xlu0 %v149
  %v151 = vpop.xlane.xlu0 %150
  %vm152 = vcmask 7168
  %153 = vst.msk [vmem:[%s4] sm:$0xff] %vm152, %v148
  %154 = vst.msk [vmem:[%s4 + $0x8] sm:$0xff] %vm152, %v151
  %v155 = vmul.f32 %v137, %v137
  %v156 = vmul.f32 %v140, %v140
  %v157 = vsel %vm143, %v155, 0.0
  %158 = vadd.xlane.f32.xlu0 %v157
  %v159 = vpop.xlane.xlu0 %158
  %v160 = vsel %vm143, %v156, 0.0
  %161 = vadd.xlane.f32.xlu0 %v160
  %v162 = vpop.xlane.xlu0 %161
  %163 = vst.msk [vmem:[%s5] sm:$0xff] %vm152, %v159
  %164 = vst.msk [vmem:[%s5 + $0x8] sm:$0xff] %vm152, %v162
  // Predicated region
  $region14: #{_lambda_.13} parent=0 // pred_check
    _
  $region15: #{_lambda_.13} parent=0 // pred_check_branch
    %166 = sbr.rel (0) target = $region17
  $region16: #{_lambda_.13} parent=0 // pred_region
    _
  $region17: #{_lambda_.13} parent=0 // pred_fallthru
    _
  // Predicated region
  $region18: #{_lambda_.13} parent=0 // pred_check
    _
  $region19: #{_lambda_.13} parent=0 // pred_check_branch
    %168 = sbr.rel (0) target = $region21
  $region20: #{_lambda_.13} parent=0 // pred_region
    _
  $region21: #{_lambda_.13} parent=0 // pred_fallthru
    _
  // Predicated region
  $region22: #{_lambda_.13} parent=0 // pred_check
    _
  $region23: #{_lambda_.13} parent=0 // pred_check_branch
    %170 = sbr.rel (0) target = $region25
  $region24: #{_lambda_.13} parent=0 // pred_region
    _
  $region25: #{_lambda_.13} parent=0 // pred_fallthru
    _
  // Predicated region
  $region26: #{_lambda_.13} parent=0 // pred_check
    _
  $region27: #{_lambda_.13} parent=0 // pred_check_branch
    %172 = sbr.rel (0) target = $region29
  $region28: #{_lambda_.13} parent=0 // pred_region
    _
  $region29: #{_lambda_.13} parent=0 // pred_fallthru
    _
  // Predicated region
  $region30: #{_lambda_.13} parent=0 // pred_check
    _
  $region31: #{_lambda_.13} parent=0 // pred_check_branch
    %174 = sbr.rel (0) target = $region33
  $region32: #{_lambda_.13} parent=0 // pred_region
    _
  $region33: #{_lambda_.13} parent=0 // pred_fallthru
    _
  // Predicated region
  $region34: #{_lambda_.13} parent=0 // pred_check
    _
  $region35: #{_lambda_.13} parent=0 // pred_check_branch
    %176 = sbr.rel (0) target = $region37
  $region36: #{_lambda_.13} parent=0 // pred_region
    _
  $region37: #{_lambda_.13} parent=0 // pred_fallthru
    _

// kernel: _lambda_.11
$region0: #{_lambda_.11}
  #allocation0 [shape = 'u32[]', space=smem, size = 0x4, offset = 0x4, fixed_abs, tag = 'smem constant byte address 0x4 - core index']
  #allocation1 [shape = 'u32[144,128]{1,0:T(1,128)}', space=vmem, size = 0x12000, scoped, tag = 'internal scratch']
  %s0 = inlined_call_operand.vmem [shape: bf16[512,32], index: 0, kind: input, shape index: {}]
  %s1 = inlined_call_operand.vmem [shape: bf16[32,2], index: 1, kind: input, shape index: {}]
  %s2 = inlined_call_operand.vmem [shape: f32[512,1], index: 2, kind: input, shape index: {}]
  %s3 = inlined_call_operand.vmem [shape: f32[512,2], index: 3, kind: output, shape index: {0}]
  %s4 = inlined_call_operand.vmem [shape: f32[1,512,1], index: 4, kind: output, shape index: {1}]
  %s5 = inlined_call_operand.vmem [shape: f32[1,512,1], index: 5, kind: output, shape index: {2}]
  %6 = xla_tuple %s3, %s4, %s5
  %s7 = sld [smem:[#allocation0]]
  $region38: #{_lambda_.11} parent=0
    _
  %s9 = ssub.s32 1, %s7
  %s10 = scalar_select 0, %s9, %s7
  // Predicated region
  $region2: #{_lambda_.11} parent=0 // pred_check
    _
  $region3: #{_lambda_.11} parent=0 // pred_check_branch
    %12 = sbr.rel (0) target = $region5
  $region4: #{_lambda_.11} parent=0 // pred_region
    _
  $region5: #{_lambda_.11} parent=0 // pred_fallthru
    _
  // Predicated region
  $region6: #{_lambda_.11} parent=0 // pred_check
    _
  $region7: #{_lambda_.11} parent=0 // pred_check_branch
    %14 = sbr.rel (0) target = $region9
  $region8: #{_lambda_.11} parent=0 // pred_region
    _
  $region9: #{_lambda_.11} parent=0 // pred_fallthru
    _
  // Predicated region
  $region10: #{_lambda_.11} parent=0 // pred_check
    _
  $region11: #{_lambda_.11} parent=0 // pred_check_branch
    %16 = sbr.rel (0) target = $region13
  $region12: #{_lambda_.11} parent=0 // pred_region
    _
  $region13: #{_lambda_.11} parent=0 // pred_fallthru
    _
  %v18 = vld [vmem:[%s0] sm:$0xf]
  %v19 = vld [vmem:[%s0 + $0x4] sm:$0xf]
  %v20 = vld [vmem:[%s0 + $0x8] sm:$0xf]
  %v21 = vld [vmem:[%s0 + $0xc] sm:$0xf]
  %v22 = vld [vmem:[%s0 + $0x10] sm:$0xf]
  %v23 = vld [vmem:[%s0 + $0x14] sm:$0xf]
  %v24 = vld [vmem:[%s0 + $0x18] sm:$0xf]
  %v25 = vld [vmem:[%s0 + $0x1c] sm:$0xf]
  %v26 = vld [vmem:[%s0 + $0x20] sm:$0xf]
  %v27 = vld [vmem:[%s0 + $0x24] sm:$0xf]
  %v28 = vld [vmem:[%s0 + $0x28] sm:$0xf]
  %v29 = vld [vmem:[%s0 + $0x2c] sm:$0xf]
  %v30 = vld [vmem:[%s0 + $0x30] sm:$0xf]
  %v31 = vld [vmem:[%s0 + $0x34] sm:$0xf]
  %v32 = vld [vmem:[%s0 + $0x38] sm:$0xf]
  %v33 = vld [vmem:[%s0 + $0x3c] sm:$0xf]
  %v34 = vld [vmem:[%s0 + $0x40] sm:$0xf]
  %v35 = vld [vmem:[%s0 + $0x44] sm:$0xf]
  %v36 = vld [vmem:[%s0 + $0x48] sm:$0xf]
  %v37 = vld [vmem:[%s0 + $0x4c] sm:$0xf]
  %v38 = vld [vmem:[%s0 + $0x50] sm:$0xf]
  %v39 = vld [vmem:[%s0 + $0x54] sm:$0xf]
  %v40 = vld [vmem:[%s0 + $0x58] sm:$0xf]
  %v41 = vld [vmem:[%s0 + $0x5c] sm:$0xf]
  %v42 = vld [vmem:[%s0 + $0x60] sm:$0xf]
  %v43 = vld [vmem:[%s0 + $0x64] sm:$0xf]
  %v44 = vld [vmem:[%s0 + $0x68] sm:$0xf]
  %v45 = vld [vmem:[%s0 + $0x6c] sm:$0xf]
  %v46 = vld [vmem:[%s0 + $0x70] sm:$0xf]
  %v47 = vld [vmem:[%s0 + $0x74] sm:$0xf]
  %v48 = vld [vmem:[%s0 + $0x78] sm:$0xf]
  %v49 = vld [vmem:[%s0 + $0x7c] sm:$0xf]
  %v50 = vld [vmem:[%s0 + $0x80] sm:$0xf]
  %v51 = vld [vmem:[%s0 + $0x84] sm:$0xf]
  %v52 = vld [vmem:[%s0 + $0x88] sm:$0xf]
  %v53 = vld [vmem:[%s0 + $0x8c] sm:$0xf]
  %v54 = vld [vmem:[%s0 + $0x90] sm:$0xf]
  %v55 = vld [vmem:[%s0 + $0x94] sm:$0xf]
  %v56 = vld [vmem:[%s0 + $0x98] sm:$0xf]
  %v57 = vld [vmem:[%s0 + $0x9c] sm:$0xf]
  %v58 = vld [vmem:[%s0 + $0xa0] sm:$0xf]
  %v59 = vld [vmem:[%s0 + $0xa4] sm:$0xf]
  %v60 = vld [vmem:[%s0 + $0xa8] sm:$0xf]
  %v61 = vld [vmem:[%s0 + $0xac] sm:$0xf]
  %v62 = vld [vmem:[%s0 + $0xb0] sm:$0xf]
  %v63 = vld [vmem:[%s0 + $0xb4] sm:$0xf]
  %v64 = vld [vmem:[%s0 + $0xb8] sm:$0xf]
  %v65 = vld [vmem:[%s0 + $0xbc] sm:$0xf]
  %v66 = vld [vmem:[%s0 + $0xc0] sm:$0xf]
  %v67 = vld [vmem:[%s0 + $0xc4] sm:$0xf]
  %v68 = vld [vmem:[%s0 + $0xc8] sm:$0xf]
  %v69 = vld [vmem:[%s0 + $0xcc] sm:$0xf]
  %v70 = vld [vmem:[%s0 + $0xd0] sm:$0xf]
  %v71 = vld [vmem:[%s0 + $0xd4] sm:$0xf]
  %v72 = vld [vmem:[%s0 + $0xd8] sm:$0xf]
  %v73 = vld [vmem:[%s0 + $0xdc] sm:$0xf]
  %v74 = vld [vmem:[%s0 + $0xe0] sm:$0xf]
  %v75 = vld [vmem:[%s0 + $0xe4] sm:$0xf]
  %v76 = vld [vmem:[%s0 + $0xe8] sm:$0xf]
  %v77 = vld [vmem:[%s0 + $0xec] sm:$0xf]
  %v78 = vld [vmem:[%s0 + $0xf0] sm:$0xf]
  %v79 = vld [vmem:[%s0 + $0xf4] sm:$0xf]
  %v80 = vld [vmem:[%s0 + $0xf8] sm:$0xf]
  %v81 = vld [vmem:[%s0 + $0xfc] sm:$0xf]
  %v82 = vld [vmem:[%s1] sm:$0xf]
  %v83 = vld [vmem:[%s1 + $0x4] sm:$0xf]
  %v84 = vld [vmem:[%s1 + $0x8] sm:$0xf]
  %v85 = vld [vmem:[%s1 + $0xc] sm:$0xf]
  %v86 = vld [vmem:[%s2] sm:$0xff]
  %v87 = vld [vmem:[%s2 + $0x8] sm:$0xff]
  %v88 = vld [vmem:[%s2 + $0x10] sm:$0xff]
  %v89 = vld [vmem:[%s2 + $0x18] sm:$0xff]
  %v90 = vld [vmem:[%s2 + $0x20] sm:$0xff]
  %v91 = vld [vmem:[%s2 + $0x28] sm:$0xff]
  %v92 = vld [vmem:[%s2 + $0x30] sm:$0xff]
  %v93 = vld [vmem:[%s2 + $0x38] sm:$0xff]
  %v94 = vld [vmem:[%s2 + $0x40] sm:$0xff]
  %v95 = vld [vmem:[%s2 + $0x48] sm:$0xff]
  %v96 = vld [vmem:[%s2 + $0x50] sm:$0xff]
  %v97 = vld [vmem:[%s2 + $0x58] sm:$0xff]
  %v98 = vld [vmem:[%s2 + $0x60] sm:$0xff]
  %v99 = vld [vmem:[%s2 + $0x68] sm:$0xff]
  %v100 = vld [vmem:[%s2 + $0x70] sm:$0xff]
  %v101 = vld [vmem:[%s2 + $0x78] sm:$0xff]
  %v102 = vld [vmem:[%s2 + $0x80] sm:$0xff]
  %v103 = vld [vmem:[%s2 + $0x88] sm:$0xff]
  %v104 = vld [vmem:[%s2 + $0x90] sm:$0xff]
  %v105 = vld [vmem:[%s2 + $0x98] sm:$0xff]
  %v106 = vld [vmem:[%s2 + $0xa0] sm:$0xff]
  %v107 = vld [vmem:[%s2 + $0xa8] sm:$0xff]
  %v108 = vld [vmem:[%s2 + $0xb0] sm:$0xff]
  %v109 = vld [vmem:[%s2 + $0xb8] sm:$0xff]
  %v110 = vld [vmem:[%s2 + $0xc0] sm:$0xff]
  %v111 = vld [vmem:[%s2 + $0xc8] sm:$0xff]
  %v112 = vld [vmem:[%s2 + $0xd0] sm:$0xff]
  %v113 = vld [vmem:[%s2 + $0xd8] sm:$0xff]
  %v114 = vld [vmem:[%s2 + $0xe0] sm:$0xff]
  %v115 = vld [vmem:[%s2 + $0xe8] sm:$0xff]
  %v116 = vld [vmem:[%s2 + $0xf0] sm:$0xff]
  %v117 = vld [vmem:[%s2 + $0xf8] sm:$0xff]
  %v118 = vld [vmem:[%s2 + $0x100] sm:$0xff]
  %v119 = vld [vmem:[%s2 + $0x108] sm:$0xff]
  %v120 = vld [vmem:[%s2 + $0x110] sm:$0xff]
  %v121 = vld [vmem:[%s2 + $0x118] sm:$0xff]
  %v122 = vld [vmem:[%s2 + $0x120] sm:$0xff]
  %v123 = vld [vmem:[%s2 + $0x128] sm:$0xff]
  %v124 = vld [vmem:[%s2 + $0x130] sm:$0xff]
  %v125 = vld [vmem:[%s2 + $0x138] sm:$0xff]
  %v126 = vld [vmem:[%s2 + $0x140] sm:$0xff]
  %v127 = vld [vmem:[%s2 + $0x148] sm:$0xff]
  %v128 = vld [vmem:[%s2 + $0x150] sm:$0xff]
  %v129 = vld [vmem:[%s2 + $0x158] sm:$0xff]
  %v130 = vld [vmem:[%s2 + $0x160] sm:$0xff]
  %v131 = vld [vmem:[%s2 + $0x168] sm:$0xff]
  %v132 = vld [vmem:[%s2 + $0x170] sm:$0xff]
  %v133 = vld [vmem:[%s2 + $0x178] sm:$0xff]
  %v134 = vld [vmem:[%s2 + $0x180] sm:$0xff]
  %v135 = vld [vmem:[%s2 + $0x188] sm:$0xff]
  %v136 = vld [vmem:[%s2 + $0x190] sm:$0xff]
  %v137 = vld [vmem:[%s2 + $0x198] sm:$0xff]
  %v138 = vld [vmem:[%s2 + $0x1a0] sm:$0xff]
  %v139 = vld [vmem:[%s2 + $0x1a8] sm:$0xff]
  %v140 = vld [vmem:[%s2 + $0x1b0] sm:$0xff]
  %v141 = vld [vmem:[%s2 + $0x1b8] sm:$0xff]
  %v142 = vld [vmem:[%s2 + $0x1c0] sm:$0xff]
  %v143 = vld [vmem:[%s2 + $0x1c8] sm:$0xff]
  %v144 = vld [vmem:[%s2 + $0x1d0] sm:$0xff]
  %v145 = vld [vmem:[%s2 + $0x1d8] sm:$0xff]
  %v146 = vld [vmem:[%s2 + $0x1e0] sm:$0xff]
  %v147 = vld [vmem:[%s2 + $0x1e8] sm:$0xff]
  %v148 = vld [vmem:[%s2 + $0x1f0] sm:$0xff]
  %v149 = vld [vmem:[%s2 + $0x1f8] sm:$0xff]
  %151 = vset.pattern.permute.xlu0 0
  %152 = vperm.xlu0 %151, %v86
  %v153 = vpop.permute.xlu0 %152
  %156 = vset.pattern.permute.xlu0 0
  %157 = vperm.xlu0 %156, %v87
  %v158 = vpop.permute.xlu0 %157
  %161 = vset.pattern.permute.xlu0 0
  %162 = vperm.xlu0 %161, %v88
  %v163 = vpop.permute.xlu0 %162
  %166 = vset.pattern.permute.xlu0 0
  %167 = vperm.xlu0 %166, %v89
  %v168 = vpop.permute.xlu0 %167
  %171 = vset.pattern.permute.xlu0 0
  %172 = vperm.xlu0 %171, %v90
  %v173 = vpop.permute.xlu0 %172
  %176 = vset.pattern.permute.xlu0 0
  %177 = vperm.xlu0 %176, %v91
  %v178 = vpop.permute.xlu0 %177
  %181 = vset.pattern.permute.xlu0 0
  %182 = vperm.xlu0 %181, %v92
  %v183 = vpop.permute.xlu0 %182
  %186 = vset.pattern.permute.xlu0 0
  %187 = vperm.xlu0 %186, %v93
  %v188 = vpop.permute.xlu0 %187
  %191 = vset.pattern.permute.xlu0 0
  %192 = vperm.xlu0 %191, %v94
  %v193 = vpop.permute.xlu0 %192
  %196 = vset.pattern.permute.xlu0 0
  %197 = vperm.xlu0 %196, %v95
  %v198 = vpop.permute.xlu0 %197
  %201 = vset.pattern.permute.xlu0 0
  %202 = vperm.xlu0 %201, %v96
  %v203 = vpop.permute.xlu0 %202
  %206 = vset.pattern.permute.xlu0 0
  %207 = vperm.xlu0 %206, %v97
  %v208 = vpop.permute.xlu0 %207
  %211 = vset.pattern.permute.xlu0 0
  %212 = vperm.xlu0 %211, %v98
  %v213 = vpop.permute.xlu0 %212
  %216 = vset.pattern.permute.xlu0 0
  %217 = vperm.xlu0 %216, %v99
  %v218 = vpop.permute.xlu0 %217
  %221 = vset.pattern.permute.xlu0 0
  %222 = vperm.xlu0 %221, %v100
  %v223 = vpop.permute.xlu0 %222
  %226 = vset.pattern.permute.xlu0 0
  %227 = vperm.xlu0 %226, %v101
  %v228 = vpop.permute.xlu0 %227
  %231 = vset.pattern.permute.xlu0 0
  %232 = vperm.xlu0 %231, %v102
  %v233 = vpop.permute.xlu0 %232
  %236 = vset.pattern.permute.xlu0 0
  %237 = vperm.xlu0 %236, %v103
  %v238 = vpop.permute.xlu0 %237
  %241 = vset.pattern.permute.xlu0 0
  %242 = vperm.xlu0 %241, %v104
  %v243 = vpop.permute.xlu0 %242
  %246 = vset.pattern.permute.xlu0 0
  %247 = vperm.xlu0 %246, %v105
  %v248 = vpop.permute.xlu0 %247
  %251 = vset.pattern.permute.xlu0 0
  %252 = vperm.xlu0 %251, %v106
  %v253 = vpop.permute.xlu0 %252
  %256 = vset.pattern.permute.xlu0 0
  %257 = vperm.xlu0 %256, %v107
  %v258 = vpop.permute.xlu0 %257
  %261 = vset.pattern.permute.xlu0 0
  %262 = vperm.xlu0 %261, %v108
  %v263 = vpop.permute.xlu0 %262
  %266 = vset.pattern.permute.xlu0 0
  %267 = vperm.xlu0 %266, %v109
  %v268 = vpop.permute.xlu0 %267
  %271 = vset.pattern.permute.xlu0 0
  %272 = vperm.xlu0 %271, %v110
  %v273 = vpop.permute.xlu0 %272
  %276 = vset.pattern.permute.xlu0 0
  %277 = vperm.xlu0 %276, %v111
  %v278 = vpop.permute.xlu0 %277
  %281 = vset.pattern.permute.xlu0 0
  %282 = vperm.xlu0 %281, %v112
  %v283 = vpop.permute.xlu0 %282
  %286 = vset.pattern.permute.xlu0 0
  %287 = vperm.xlu0 %286, %v113
  %v288 = vpop.permute.xlu0 %287
  %291 = vset.pattern.permute.xlu0 0
  %292 = vperm.xlu0 %291, %v114
  %v293 = vpop.permute.xlu0 %292
  %296 = vset.pattern.permute.xlu0 0
  %297 = vperm.xlu0 %296, %v115
  %v298 = vpop.permute.xlu0 %297
  %301 = vset.pattern.permute.xlu0 0
  %302 = vperm.xlu0 %301, %v116
  %v303 = vpop.permute.xlu0 %302
  %306 = vset.pattern.permute.xlu0 0
  %307 = vperm.xlu0 %306, %v117
  %v308 = vpop.permute.xlu0 %307
  %311 = vset.pattern.permute.xlu0 0
  %312 = vperm.xlu0 %311, %v118
  %v313 = vpop.permute.xlu0 %312
  %316 = vset.pattern.permute.xlu0 0
  %317 = vperm.xlu0 %316, %v119
  %v318 = vpop.permute.xlu0 %317
  %321 = vset.pattern.permute.xlu0 0
  %322 = vperm.xlu0 %321, %v120
  %v323 = vpop.permute.xlu0 %322
  %326 = vset.pattern.permute.xlu0 0
  %327 = vperm.xlu0 %326, %v121
  %v328 = vpop.permute.xlu0 %327
  %331 = vset.pattern.permute.xlu0 0
  %332 = vperm.xlu0 %331, %v122
  %v333 = vpop.permute.xlu0 %332
  %336 = vset.pattern.permute.xlu0 0
  %337 = vperm.xlu0 %336, %v123
  %v338 = vpop.permute.xlu0 %337
  %341 = vset.pattern.permute.xlu0 0
  %342 = vperm.xlu0 %341, %v124
  %v343 = vpop.permute.xlu0 %342
  %346 = vset.pattern.permute.xlu0 0
  %347 = vperm.xlu0 %346, %v125
  %v348 = vpop.permute.xlu0 %347
  %351 = vset.pattern.permute.xlu0 0
  %352 = vperm.xlu0 %351, %v126
  %v353 = vpop.permute.xlu0 %352
  %356 = vset.pattern.permute.xlu0 0
  %357 = vperm.xlu0 %356, %v127
  %v358 = vpop.permute.xlu0 %357
  %361 = vset.pattern.permute.xlu0 0
  %362 = vperm.xlu0 %361, %v128
  %v363 = vpop.permute.xlu0 %362
  %366 = vset.pattern.permute.xlu0 0
  %367 = vperm.xlu0 %366, %v129
  %v368 = vpop.permute.xlu0 %367
  %371 = vset.pattern.permute.xlu0 0
  %372 = vperm.xlu0 %371, %v130
  %v373 = vpop.permute.xlu0 %372
  %376 = vset.pattern.permute.xlu0 0
  %377 = vperm.xlu0 %376, %v131
  %v378 = vpop.permute.xlu0 %377
  %381 = vset.pattern.permute.xlu0 0
  %382 = vperm.xlu0 %381, %v132
  %v383 = vpop.permute.xlu0 %382
  %386 = vset.pattern.permute.xlu0 0
  %387 = vperm.xlu0 %386, %v133
  %v388 = vpop.permute.xlu0 %387
  %391 = vset.pattern.permute.xlu0 0
  %392 = vperm.xlu0 %391, %v134
  %v393 = vpop.permute.xlu0 %392
  %396 = vset.pattern.permute.xlu0 0
  %397 = vperm.xlu0 %396, %v135
  %v398 = vpop.permute.xlu0 %397
  %401 = vset.pattern.permute.xlu0 0
  %402 = vperm.xlu0 %401, %v136
  %v403 = vpop.permute.xlu0 %402
  %406 = vset.pattern.permute.xlu0 0
  %407 = vperm.xlu0 %406, %v137
  %v408 = vpop.permute.xlu0 %407
  %411 = vset.pattern.permute.xlu0 0
  %412 = vperm.xlu0 %411, %v138
  %v413 = vpop.permute.xlu0 %412
  %416 = vset.pattern.permute.xlu0 0
  %417 = vperm.xlu0 %416, %v139
  %v418 = vpop.permute.xlu0 %417
  %421 = vset.pattern.permute.xlu0 0
  %422 = vperm.xlu0 %421, %v140
  %v423 = vpop.permute.xlu0 %422
  %426 = vset.pattern.permute.xlu0 0
  %427 = vperm.xlu0 %426, %v141
  %v428 = vpop.permute.xlu0 %427
  %431 = vset.pattern.permute.xlu0 0
  %432 = vperm.xlu0 %431, %v142
  %v433 = vpop.permute.xlu0 %432
  %436 = vset.pattern.permute.xlu0 0
  %437 = vperm.xlu0 %436, %v143
  %v438 = vpop.permute.xlu0 %437
  %441 = vset.pattern.permute.xlu0 0
  %442 = vperm.xlu0 %441, %v144
  %v443 = vpop.permute.xlu0 %442
  %446 = vset.pattern.permute.xlu0 0
  %447 = vperm.xlu0 %446, %v145
  %v448 = vpop.permute.xlu0 %447
  %451 = vset.pattern.permute.xlu0 0
  %452 = vperm.xlu0 %451, %v146
  %v453 = vpop.permute.xlu0 %452
  %456 = vset.pattern.permute.xlu0 0
  %457 = vperm.xlu0 %456, %v147
  %v458 = vpop.permute.xlu0 %457
  %461 = vset.pattern.permute.xlu0 0
  %462 = vperm.xlu0 %461, %v148
  %v463 = vpop.permute.xlu0 %462
  %466 = vset.pattern.permute.xlu0 0
  %467 = vperm.xlu0 %466, %v149
  %v468 = vpop.permute.xlu0 %467
  %v534 = vunpack.c.l.b16 %v18
  %v535 = vunpack.c.l.b16 %v19
  %v536 = vunpack.c.l.b16 %v20
  %v537 = vunpack.c.l.b16 %v21
  %v538 = vunpack.c.l.b16 %v22
  %v539 = vunpack.c.l.b16 %v23
  %v540 = vunpack.c.l.b16 %v24
  %v541 = vunpack.c.l.b16 %v25
  %v542 = vunpack.c.l.b16 %v26
  %v543 = vunpack.c.l.b16 %v27
  %v544 = vunpack.c.l.b16 %v28
  %v545 = vunpack.c.l.b16 %v29
  %v546 = vunpack.c.l.b16 %v30
  %v547 = vunpack.c.l.b16 %v31
  %v548 = vunpack.c.l.b16 %v32
  %v549 = vunpack.c.l.b16 %v33
  %v550 = vunpack.c.l.b16 %v34
  %v551 = vunpack.c.l.b16 %v35
  %v552 = vunpack.c.l.b16 %v36
  %v553 = vunpack.c.l.b16 %v37
  %v554 = vunpack.c.l.b16 %v38
  %v555 = vunpack.c.l.b16 %v39
  %v556 = vunpack.c.l.b16 %v40
  %v557 = vunpack.c.l.b16 %v41
  %v558 = vunpack.c.l.b16 %v42
  %v559 = vunpack.c.l.b16 %v43
  %v560 = vunpack.c.l.b16 %v44
  %v561 = vunpack.c.l.b16 %v45
  %v562 = vunpack.c.l.b16 %v46
  %v563 = vunpack.c.l.b16 %v47
  %v564 = vunpack.c.l.b16 %v48
  %v565 = vunpack.c.l.b16 %v49
  %v566 = vunpack.c.l.b16 %v50
  %v567 = vunpack.c.l.b16 %v51
  %v568 = vunpack.c.l.b16 %v52
  %v569 = vunpack.c.l.b16 %v53
  %v570 = vunpack.c.l.b16 %v54
  %v571 = vunpack.c.l.b16 %v55
  %v572 = vunpack.c.l.b16 %v56
  %v573 = vunpack.c.l.b16 %v57
  %v574 = vunpack.c.l.b16 %v58
  %v575 = vunpack.c.l.b16 %v59
  %v576 = vunpack.c.l.b16 %v60
  %v577 = vunpack.c.l.b16 %v61
  %v578 = vunpack.c.l.b16 %v62
  %v579 = vunpack.c.l.b16 %v63
  %v580 = vunpack.c.l.b16 %v64
  %v581 = vunpack.c.l.b16 %v65
  %v582 = vunpack.c.l.b16 %v66
  %v583 = vunpack.c.l.b16 %v67
  %v584 = vunpack.c.l.b16 %v68
  %v585 = vunpack.c.l.b16 %v69
  %v586 = vunpack.c.l.b16 %v70
  %v587 = vunpack.c.l.b16 %v71
  %v588 = vunpack.c.l.b16 %v72
  %v589 = vunpack.c.l.b16 %v73
  %v590 = vunpack.c.l.b16 %v74
  %v591 = vunpack.c.l.b16 %v75
  %v592 = vunpack.c.l.b16 %v76
  %v593 = vunpack.c.l.b16 %v77
  %v594 = vunpack.c.l.b16 %v78
  %v595 = vunpack.c.l.b16 %v79
  %v596 = vunpack.c.l.b16 %v80
  %v597 = vunpack.c.l.b16 %v81
  %v598 = vpack.c.b16 %v535, %v534
  %v599 = vpack.c.b16 %v537, %v536
  %v600 = vpack.c.b16 %v539, %v538
  %v601 = vpack.c.b16 %v541, %v540
  %v602 = vpack.c.b16 %v543, %v542
  %v603 = vpack.c.b16 %v545, %v544
  %v604 = vpack.c.b16 %v547, %v546
  %v605 = vpack.c.b16 %v549, %v548
  %v606 = vpack.c.b16 %v551, %v550
  %v607 = vpack.c.b16 %v553, %v552
  %v608 = vpack.c.b16 %v555, %v554
  %v609 = vpack.c.b16 %v557, %v556
  %v610 = vpack.c.b16 %v559, %v558
  %v611 = vpack.c.b16 %v561, %v560
  %v612 = vpack.c.b16 %v563, %v562
  %v613 = vpack.c.b16 %v565, %v564
  %v614 = vpack.c.b16 %v567, %v566
  %v615 = vpack.c.b16 %v569, %v568
  %v616 = vpack.c.b16 %v571, %v570
  %v617 = vpack.c.b16 %v573, %v572
  %v618 = vpack.c.b16 %v575, %v574
  %v619 = vpack.c.b16 %v577, %v576
  %v620 = vpack.c.b16 %v579, %v578
  %v621 = vpack.c.b16 %v581, %v580
  %v622 = vpack.c.b16 %v583, %v582
  %v623 = vpack.c.b16 %v585, %v584
  %v624 = vpack.c.b16 %v587, %v586
  %v625 = vpack.c.b16 %v589, %v588
  %v626 = vpack.c.b16 %v591, %v590
  %v627 = vpack.c.b16 %v593, %v592
  %v628 = vpack.c.b16 %v595, %v594
  %v629 = vpack.c.b16 %v597, %v596
  %v634 = vunpack.c.l.b16 %v82
  %v635 = vunpack.c.l.b16 %v83
  %v636 = vunpack.c.l.b16 %v84
  %v637 = vunpack.c.l.b16 %v85
  %v638 = vpack.c.b16 %v635, %v634
  %v639 = vpack.c.b16 %v637, %v636
  %vm642 = vcmask 261120
  %v644 = vsel %vm642, %v598, 0
  %v647 = vsel %vm642, %v599, 0
  %v650 = vsel %vm642, %v600, 0
  %v653 = vsel %vm642, %v601, 0
  %v656 = vsel %vm642, %v602, 0
  %v659 = vsel %vm642, %v603, 0
  %v662 = vsel %vm642, %v604, 0
  %v665 = vsel %vm642, %v605, 0
  %v668 = vsel %vm642, %v606, 0
  %v671 = vsel %vm642, %v607, 0
  %v674 = vsel %vm642, %v608, 0
  %v677 = vsel %vm642, %v609, 0
  %v680 = vsel %vm642, %v610, 0
  %v683 = vsel %vm642, %v611, 0
  %v686 = vsel %vm642, %v612, 0
  %v689 = vsel %vm642, %v613, 0
  %v692 = vsel %vm642, %v614, 0
  %v695 = vsel %vm642, %v615, 0
  %v698 = vsel %vm642, %v616, 0
  %v701 = vsel %vm642, %v617, 0
  %v704 = vsel %vm642, %v618, 0
  %v707 = vsel %vm642, %v619, 0
  %v710 = vsel %vm642, %v620, 0
  %v713 = vsel %vm642, %v621, 0
  %v716 = vsel %vm642, %v622, 0
  %v719 = vsel %vm642, %v623, 0
  %v722 = vsel %vm642, %v624, 0
  %v725 = vsel %vm642, %v625, 0
  %v728 = vsel %vm642, %v626, 0
  %v731 = vsel %vm642, %v627, 0
  %v734 = vsel %vm642, %v628, 0
  %v737 = vsel %vm642, %v629, 0
  %739 = vmatprep.subr.bf16.mxu0 0
  %740 = vmatpush1.bf16.msra.mxu0 %v638
  %741 = vmatprep.subr.bf16.mxu0 0
  %742 = vmatpush1.bf16.msra.mxu0 %v639
  %743 = vmatprep.subr.bf16.mxu0 0
  %744 = vmatpush1.bf16.msra.mxu0 0
  %745 = vmatprep.subr.bf16.mxu0 0
  %746 = vmatpush1.bf16.msra.mxu0 0
  %747 = vmatprep.subr.bf16.mxu0 0
  %748 = vmatpush1.bf16.msra.mxu0 0
  %749 = vmatprep.subr.bf16.mxu0 0
  %750 = vmatpush1.bf16.msra.mxu0 0
  %751 = vmatprep.subr.bf16.mxu0 0
  %752 = vmatpush1.bf16.msra.mxu0 0
  %753 = vmatprep.subr.bf16.mxu0 0
  %754 = vmatpush1.bf16.msra.mxu0 0
  %755 = vmatprep.subr.bf16.mxu0 0
  %756 = vmatpush1.bf16.msra.mxu0 0
  %757 = vmatprep.subr.bf16.mxu0 0
  %758 = vmatpush1.bf16.msra.mxu0 0
  %759 = vmatprep.subr.bf16.mxu0 0
  %760 = vmatpush1.bf16.msra.mxu0 0
  %761 = vmatprep.subr.bf16.mxu0 0
  %762 = vmatpush1.bf16.msra.mxu0 0
  %763 = vmatprep.subr.bf16.mxu0 0
  %764 = vmatpush1.bf16.msra.mxu0 0
  %765 = vmatprep.subr.bf16.mxu0 0
  %766 = vmatpush1.bf16.msra.mxu0 0
  %767 = vmatprep.subr.bf16.mxu0 0
  %768 = vmatpush1.bf16.msra.mxu0 0
  %769 = vmatprep.subr.bf16.mxu0 0
  %770 = vmatpush1.bf16.msra.mxu0 0
  %771 = vmatprep.mubr.bf16.mxu0 0
  %772 = vmatmul.mubr.bf16.gmra.mrb[0].mxu0 %v644
  %v773 = vpop.f32.mrb[0].mxu0
  %v774 = vadd.f32 %v153, %v773
  %v775 = vpop.f32.mrb[0].mxu0
  %v776 = vpop.f32.mrb[0].mxu0
  %v777 = vadd.f32 %v158, %v776
  %v778 = vpop.f32.mrb[0].mxu0
  %779 = vmatprep.mubr.bf16.mxu0 0
  %780 = vmatmul.mubr.bf16.gmra.mrb[0].mxu0 %v647
  %v781 = vpop.f32.mrb[0].mxu0
  %v782 = vadd.f32 %v163, %v781
  %v783 = vpop.f32.mrb[0].mxu0
  %v784 = vpop.f32.mrb[0].mxu0
  %v785 = vadd.f32 %v168, %v784
  %v786 = vpop.f32.mrb[0].mxu0
  %787 = vmatprep.mubr.bf16.mxu0 0
  %788 = vmatmul.mubr.bf16.gmra.mrb[0].mxu0 %v650
  %v789 = vpop.f32.mrb[0].mxu0
  %v790 = vadd.f32 %v173, %v789
  %v791 = vpop.f32.mrb[0].mxu0
  %v792 = vpop.f32.mrb[0].mxu0
  %v793 = vadd.f32 %v178, %v792
  %v794 = vpop.f32.mrb[0].mxu0
  %795 = vmatprep.mubr.bf16.mxu0 0
  %796 = vmatmul.mubr.bf16.gmra.mrb[0].mxu0 %v653
  %v797 = vpop.f32.mrb[0].mxu0
  %v798 = vadd.f32 %v183, %v797
  %v799 = vpop.f32.mrb[0].mxu0
  %v800 = vpop.f32.mrb[0].mxu0
  %v801 = vadd.f32 %v188, %v800
  %v802 = vpop.f32.mrb[0].mxu0
  %803 = vmatprep.mubr.bf16.mxu0 0
  %804 = vmatmul.mubr.bf16.gmra.mrb[0].mxu0 %v656
  %v805 = vpop.f32.mrb[0].mxu0
  %v806 = vadd.f32 %v193, %v805
  %v807 = vpop.f32.mrb[0].mxu0
  %v808 = vpop.f32.mrb[0].mxu0
  %v809 = vadd.f32 %v198, %v808
  %v810 = vpop.f32.mrb[0].mxu0
  %811 = vmatprep.mubr.bf16.mxu0 0
  %812 = vmatmul.mubr.bf16.gmra.mrb[0].mxu0 %v659
  %v813 = vpop.f32.mrb[0].mxu0
  %v814 = vadd.f32 %v203, %v813
  %v815 = vpop.f32.mrb[0].mxu0
  %v816 = vpop.f32.mrb[0].mxu0
  %v817 = vadd.f32 %v208, %v816
  %v818 = vpop.f32.mrb[0].mxu0
  %819 = vmatprep.mubr.bf16.mxu0 0
  %820 = vmatmul.mubr.bf16.gmra.mrb[0].mxu0 %v662
  %v821 = vpop.f32.mrb[0].mxu0
  %v822 = vadd.f32 %v213, %v821
  %v823 = vpop.f32.mrb[0].mxu0
  %v824 = vpop.f32.mrb[0].mxu0
  %v825 = vadd.f32 %v218, %v824
  %v826 = vpop.f32.mrb[0].mxu0
  %827 = vmatprep.mubr.bf16.mxu0 0
  %828 = vmatmul.mubr.bf16.gmra.mrb[0].mxu0 %v665
  %v829 = vpop.f32.mrb[0].mxu0
  %v830 = vadd.f32 %v223, %v829
  %v831 = vpop.f32.mrb[0].mxu0
  %v832 = vpop.f32.mrb[0].mxu0
  %v833 = vadd.f32 %v228, %v832
  %v834 = vpop.f32.mrb[0].mxu0
  %835 = vmatprep.mubr.bf16.mxu0 0
  %836 = vmatmul.mubr.bf16.gmra.mrb[0].mxu0 %v668
  %v837 = vpop.f32.mrb[0].mxu0
  %v838 = vadd.f32 %v233, %v837
  %v839 = vpop.f32.mrb[0].mxu0
  %v840 = vpop.f32.mrb[0].mxu0
  %v841 = vadd.f32 %v238, %v840
  %v842 = vpop.f32.mrb[0].mxu0
  %843 = vmatprep.mubr.bf16.mxu0 0
  %844 = vmatmul.mubr.bf16.gmra.mrb[0].mxu0 %v671
  %v845 = vpop.f32.mrb[0].mxu0
  %v846 = vadd.f32 %v243, %v845
  %v847 = vpop.f32.mrb[0].mxu0
  %v848 = vpop.f32.mrb[0].mxu0
  %v849 = vadd.f32 %v248, %v848
  %v850 = vpop.f32.mrb[0].mxu0
  %851 = vmatprep.mubr.bf16.mxu0 0
  %852 = vmatmul.mubr.bf16.gmra.mrb[0].mxu0 %v674
  %v853 = vpop.f32.mrb[0].mxu0
  %v854 = vadd.f32 %v253, %v853
  %v855 = vpop.f32.mrb[0].mxu0
  %v856 = vpop.f32.mrb[0].mxu0
  %v857 = vadd.f32 %v258, %v856
  %v858 = vpop.f32.mrb[0].mxu0
  %859 = vmatprep.mubr.bf16.mxu0 0
  %860 = vmatmul.mubr.bf16.gmra.mrb[0].mxu0 %v677
  %v861 = vpop.f32.mrb[0].mxu0
  %v862 = vadd.f32 %v263, %v861
  %v863 = vpop.f32.mrb[0].mxu0
  %v864 = vpop.f32.mrb[0].mxu0
  %v865 = vadd.f32 %v268, %v864
  %v866 = vpop.f32.mrb[0].mxu0
  %867 = vmatprep.mubr.bf16.mxu0 0
  %868 = vmatmul.mubr.bf16.gmra.mrb[0].mxu0 %v680
  %v869 = vpop.f32.mrb[0].mxu0
  %v870 = vadd.f32 %v273, %v869
  %v871 = vpop.f32.mrb[0].mxu0
  %v872 = vpop.f32.mrb[0].mxu0
  %v873 = vadd.f32 %v278, %v872
  %v874 = vpop.f32.mrb[0].mxu0
  %875 = vmatprep.mubr.bf16.mxu0 0
  %876 = vmatmul.mubr.bf16.gmra.mrb[0].mxu0 %v683
  %v877 = vpop.f32.mrb[0].mxu0
  %v878 = vadd.f32 %v283, %v877
  %v879 = vpop.f32.mrb[0].mxu0
  %v880 = vpop.f32.mrb[0].mxu0
  %v881 = vadd.f32 %v288, %v880
  %v882 = vpop.f32.mrb[0].mxu0
  %883 = vmatprep.mubr.bf16.mxu0 0
  %884 = vmatmul.mubr.bf16.gmra.mrb[0].mxu0 %v686
  %v885 = vpop.f32.mrb[0].mxu0
  %v886 = vadd.f32 %v293, %v885
  %v887 = vpop.f32.mrb[0].mxu0
  %v888 = vpop.f32.mrb[0].mxu0
  %v889 = vadd.f32 %v298, %v888
  %v890 = vpop.f32.mrb[0].mxu0
  %891 = vmatprep.mubr.bf16.mxu0 0
  %892 = vmatmul.mubr.bf16.gmra.mrb[0].mxu0 %v689
  %v893 = vpop.f32.mrb[0].mxu0
  %v894 = vadd.f32 %v303, %v893
  %v895 = vpop.f32.mrb[0].mxu0
  %v896 = vpop.f32.mrb[0].mxu0
  %v897 = vadd.f32 %v308, %v896
  %v898 = vpop.f32.mrb[0].mxu0
  %899 = vmatprep.mubr.bf16.mxu0 0
  %900 = vmatmul.mubr.bf16.gmra.mrb[0].mxu0 %v692
  %v901 = vpop.f32.mrb[0].mxu0
  %v902 = vadd.f32 %v313, %v901
  %v903 = vpop.f32.mrb[0].mxu0
  %v904 = vpop.f32.mrb[0].mxu0
  %v905 = vadd.f32 %v318, %v904
  %v906 = vpop.f32.mrb[0].mxu0
  %907 = vmatprep.mubr.bf16.mxu0 0
  %908 = vmatmul.mubr.bf16.gmra.mrb[0].mxu0 %v695
  %v909 = vpop.f32.mrb[0].mxu0
  %v910 = vadd.f32 %v323, %v909
  %v911 = vpop.f32.mrb[0].mxu0
  %v912 = vpop.f32.mrb[0].mxu0
  %v913 = vadd.f32 %v328, %v912
  %v914 = vpop.f32.mrb[0].mxu0
  %915 = vmatprep.mubr.bf16.mxu0 0
  %916 = vmatmul.mubr.bf16.gmra.mrb[0].mxu0 %v698
  %v917 = vpop.f32.mrb[0].mxu0
  %v918 = vadd.f32 %v333, %v917
  %v919 = vpop.f32.mrb[0].mxu0
  %v920 = vpop.f32.mrb[0].mxu0
  %v921 = vadd.f32 %v338, %v920
  %v922 = vpop.f32.mrb[0].mxu0
  %923 = vmatprep.mubr.bf16.mxu0 0
  %924 = vmatmul.mubr.bf16.gmra.mrb[0].mxu0 %v701
  %v925 = vpop.f32.mrb[0].mxu0
  %v926 = vadd.f32 %v343, %v925
  %v927 = vpop.f32.mrb[0].mxu0
  %v928 = vpop.f32.mrb[0].mxu0
  %v929 = vadd.f32 %v348, %v928
  %v930 = vpop.f32.mrb[0].mxu0
  %931 = vmatprep.mubr.bf16.mxu0 0
  %932 = vmatmul.mubr.bf16.gmra.mrb[0].mxu0 %v704
  %v933 = vpop.f32.mrb[0].mxu0
  %v934 = vadd.f32 %v353, %v933
  %v935 = vpop.f32.mrb[0].mxu0
  %v936 = vpop.f32.mrb[0].mxu0
  %v937 = vadd.f32 %v358, %v936
  %v938 = vpop.f32.mrb[0].mxu0
  %939 = vmatprep.mubr.bf16.mxu0 0
  %940 = vmatmul.mubr.bf16.gmra.mrb[0].mxu0 %v707
  %v941 = vpop.f32.mrb[0].mxu0
  %v942 = vadd.f32 %v363, %v941
  %v943 = vpop.f32.mrb[0].mxu0
  %v944 = vpop.f32.mrb[0].mxu0
  %v945 = vadd.f32 %v368, %v944
  %v946 = vpop.f32.mrb[0].mxu0
  %947 = vmatprep.mubr.bf16.mxu0 0
  %948 = vmatmul.mubr.bf16.gmra.mrb[0].mxu0 %v710
  %v949 = vpop.f32.mrb[0].mxu0
  %v950 = vadd.f32 %v373, %v949
  %v951 = vpop.f32.mrb[0].mxu0
  %v952 = vpop.f32.mrb[0].mxu0
  %v953 = vadd.f32 %v378, %v952
  %v954 = vpop.f32.mrb[0].mxu0
  %955 = vmatprep.mubr.bf16.mxu0 0
  %956 = vmatmul.mubr.bf16.gmra.mrb[0].mxu0 %v713
  %v957 = vpop.f32.mrb[0].mxu0
  %v958 = vadd.f32 %v383, %v957
  %v959 = vpop.f32.mrb[0].mxu0
  %v960 = vpop.f32.mrb[0].mxu0
  %v961 = vadd.f32 %v388, %v960
  %v962 = vpop.f32.mrb[0].mxu0
  %963 = vmatprep.mubr.bf16.mxu0 0
  %964 = vmatmul.mubr.bf16.gmra.mrb[0].mxu0 %v716
  %v965 = vpop.f32.mrb[0].mxu0
  %v966 = vadd.f32 %v393, %v965
  %v967 = vpop.f32.mrb[0].mxu0
  %v968 = vpop.f32.mrb[0].mxu0
  %v969 = vadd.f32 %v398, %v968
  %v970 = vpop.f32.mrb[0].mxu0
  %971 = vmatprep.mubr.bf16.mxu0 0
  %972 = vmatmul.mubr.bf16.gmra.mrb[0].mxu0 %v719
  %v973 = vpop.f32.mrb[0].mxu0
  %v974 = vadd.f32 %v403, %v973
  %v975 = vpop.f32.mrb[0].mxu0
  %v976 = vpop.f32.mrb[0].mxu0
  %v977 = vadd.f32 %v408, %v976
  %v978 = vpop.f32.mrb[0].mxu0
  %979 = vmatprep.mubr.bf16.mxu0 0
  %980 = vmatmul.mubr.bf16.gmra.mrb[0].mxu0 %v722
  %v981 = vpop.f32.mrb[0].mxu0
  %v982 = vadd.f32 %v413, %v981
  %v983 = vpop.f32.mrb[0].mxu0
  %v984 = vpop.f32.mrb[0].mxu0
  %v985 = vadd.f32 %v418, %v984
  %v986 = vpop.f32.mrb[0].mxu0
  %987 = vmatprep.mubr.bf16.mxu0 0
  %988 = vmatmul.mubr.bf16.gmra.mrb[0].mxu0 %v725
  %v989 = vpop.f32.mrb[0].mxu0
  %v990 = vadd.f32 %v423, %v989
  %v991 = vpop.f32.mrb[0].mxu0
  %v992 = vpop.f32.mrb[0].mxu0
  %v993 = vadd.f32 %v428, %v992
  %v994 = vpop.f32.mrb[0].mxu0
  %995 = vmatprep.mubr.bf16.mxu0 0
  %996 = vmatmul.mubr.bf16.gmra.mrb[0].mxu0 %v728
  %v997 = vpop.f32.mrb[0].mxu0
  %v998 = vadd.f32 %v433, %v997
  %v999 = vpop.f32.mrb[0].mxu0
  %v1000 = vpop.f32.mrb[0].mxu0
  %v1001 = vadd.f32 %v438, %v1000
  %v1002 = vpop.f32.mrb[0].mxu0
  %1003 = vmatprep.mubr.bf16.mxu0 0
  %1004 = vmatmul.mubr.bf16.gmra.mrb[0].mxu0 %v731
  %v1005 = vpop.f32.mrb[0].mxu0
  %v1006 = vadd.f32 %v443, %v1005
  %v1007 = vpop.f32.mrb[0].mxu0
  %v1008 = vpop.f32.mrb[0].mxu0
  %v1009 = vadd.f32 %v448, %v1008
  %v1010 = vpop.f32.mrb[0].mxu0
  %1011 = vmatprep.mubr.bf16.mxu0 0
  %1012 = vmatmul.mubr.bf16.gmra.mrb[0].mxu0 %v734
  %v1013 = vpop.f32.mrb[0].mxu0
  %v1014 = vadd.f32 %v453, %v1013
  %v1015 = vpop.f32.mrb[0].mxu0
  %v1016 = vpop.f32.mrb[0].mxu0
  %v1017 = vadd.f32 %v458, %v1016
  %v1018 = vpop.f32.mrb[0].mxu0
  %1019 = vmatprep.mubr.bf16.mxu0 0
  %1020 = vmatmul.mubr.bf16.gmra.mrb[0].mxu0 %v737
  %v1021 = vpop.f32.mrb[0].mxu0
  %v1022 = vadd.f32 %v463, %v1021
  %v1023 = vpop.f32.mrb[0].mxu0
  %v1024 = vpop.f32.mrb[0].mxu0
  %v1025 = vadd.f32 %v468, %v1024
  %v1026 = vpop.f32.mrb[0].mxu0
  %1027 = vdwg.mxu0
  %vm1028 = vcmask 15360
  %1029 = vst.msk [vmem:[%s3] sm:$0xff] %vm1028, %v774
  %1030 = vst.msk [vmem:[%s3 + $0x8] sm:$0xff] %vm1028, %v777
  %1031 = vst.msk [vmem:[%s3 + $0x10] sm:$0xff] %vm1028, %v782
  %1032 = vst.msk [vmem:[%s3 + $0x18] sm:$0xff] %vm1028, %v785
  %1033 = vst.msk [vmem:[%s3 + $0x20] sm:$0xff] %vm1028, %v790
  %1034 = vst.msk [vmem:[%s3 + $0x28] sm:$0xff] %vm1028, %v793
  %1035 = vst.msk [vmem:[%s3 + $0x30] sm:$0xff] %vm1028, %v798
  %1036 = vst.msk [vmem:[%s3 + $0x38] sm:$0xff] %vm1028, %v801
  %1037 = vst.msk [vmem:[%s3 + $0x40] sm:$0xff] %vm1028, %v806
  %1038 = vst.msk [vmem:[%s3 + $0x48] sm:$0xff] %vm1028, %v809
  %1039 = vst.msk [vmem:[%s3 + $0x50] sm:$0xff] %vm1028, %v814
  %1040 = vst.msk [vmem:[%s3 + $0x58] sm:$0xff] %vm1028, %v817
  %1041 = vst.msk [vmem:[%s3 + $0x60] sm:$0xff] %vm1028, %v822
  %1042 = vst.msk [vmem:[%s3 + $0x68] sm:$0xff] %vm1028, %v825
  %1043 = vst.msk [vmem:[%s3 + $0x70] sm:$0xff] %vm1028, %v830
  %1044 = vst.msk [vmem:[%s3 + $0x78] sm:$0xff] %vm1028, %v833
  %1045 = vst.msk [vmem:[%s3 + $0x80] sm:$0xff] %vm1028, %v838
  %1046 = vst.msk [vmem:[%s3 + $0x88] sm:$0xff] %vm1028, %v841
  %1047 = vst.msk [vmem:[%s3 + $0x90] sm:$0xff] %vm1028, %v846
  %1048 = vst.msk [vmem:[%s3 + $0x98] sm:$0xff] %vm1028, %v849
  %1049 = vst.msk [vmem:[%s3 + $0xa0] sm:$0xff] %vm1028, %v854
  %1050 = vst.msk [vmem:[%s3 + $0xa8] sm:$0xff] %vm1028, %v857
  %1051 = vst.msk [vmem:[%s3 + $0xb0] sm:$0xff] %vm1028, %v862
  %1052 = vst.msk [vmem:[%s3 + $0xb8] sm:$0xff] %vm1028, %v865
  %1053 = vst.msk [vmem:[%s3 + $0xc0] sm:$0xff] %vm1028, %v870
  %1054 = vst.msk [vmem:[%s3 + $0xc8] sm:$0xff] %vm1028, %v873
  %1055 = vst.msk [vmem:[%s3 + $0xd0] sm:$0xff] %vm1028, %v878
  %1056 = vst.msk [vmem:[%s3 + $0xd8] sm:$0xff] %vm1028, %v881
  %1057 = vst.msk [vmem:[%s3 + $0xe0] sm:$0xff] %vm1028, %v886
  %1058 = vst.msk [vmem:[%s3 + $0xe8] sm:$0xff] %vm1028, %v889
  %1059 = vst.msk [vmem:[%s3 + $0xf0] sm:$0xff] %vm1028, %v894
  %1060 = vst.msk [vmem:[%s3 + $0xf8] sm:$0xff] %vm1028, %v897
  %1061 = vst.msk [vmem:[%s3 + $0x100] sm:$0xff] %vm1028, %v902
  %1062 = vst.msk [vmem:[%s3 + $0x108] sm:$0xff] %vm1028, %v905
  %1063 = vst.msk [vmem:[%s3 + $0x110] sm:$0xff] %vm1028, %v910
  %1064 = vst.msk [vmem:[%s3 + $0x118] sm:$0xff] %vm1028, %v913
  %1065 = vst.msk [vmem:[%s3 + $0x120] sm:$0xff] %vm1028, %v918
  %1066 = vst.msk [vmem:[%s3 + $0x128] sm:$0xff] %vm1028, %v921
  %1067 = vst.msk [vmem:[%s3 + $0x130] sm:$0xff] %vm1028, %v926
  %1068 = vst.msk [vmem:[%s3 + $0x138] sm:$0xff] %vm1028, %v929
  %1069 = vst.msk [vmem:[%s3 + $0x140] sm:$0xff] %vm1028, %v934
  %1070 = vst.msk [vmem:[%s3 + $0x148] sm:$0xff] %vm1028, %v937
  %1071 = vst.msk [vmem:[%s3 + $0x150] sm:$0xff] %vm1028, %v942
  %1072 = vst.msk [vmem:[%s3 + $0x158] sm:$0xff] %vm1028, %v945
  %1073 = vst.msk [vmem:[%s3 + $0x160] sm:$0xff] %vm1028, %v950
  %1074 = vst.msk [vmem:[%s3 + $0x168] sm:$0xff] %vm1028, %v953
  %1075 = vst.msk [vmem:[%s3 + $0x170] sm:$0xff] %vm1028, %v958
  %1076 = vst.msk [vmem:[%s3 + $0x178] sm:$0xff] %vm1028, %v961
  %1077 = vst.msk [vmem:[%s3 + $0x180] sm:$0xff] %vm1028, %v966
  %1078 = vst.msk [vmem:[%s3 + $0x188] sm:$0xff] %vm1028, %v969
  %1079 = vst.msk [vmem:[%s3 + $0x190] sm:$0xff] %vm1028, %v974
  %1080 = vst.msk [vmem:[%s3 + $0x198] sm:$0xff] %vm1028, %v977
  %1081 = vst.msk [vmem:[%s3 + $0x1a0] sm:$0xff] %vm1028, %v982
  %1082 = vst.msk [vmem:[%s3 + $0x1a8] sm:$0xff] %vm1028, %v985
  %1083 = vst.msk [vmem:[%s3 + $0x1b0] sm:$0xff] %vm1028, %v990
  %1084 = vst.msk [vmem:[%s3 + $0x1b8] sm:$0xff] %vm1028, %v993
  %1085 = vst.msk [vmem:[%s3 + $0x1c0] sm:$0xff] %vm1028, %v998
  %1086 = vst.msk [vmem:[%s3 + $0x1c8] sm:$0xff] %vm1028, %v1001
  %1087 = vst.msk [vmem:[%s3 + $0x1d0] sm:$0xff] %vm1028, %v1006
  %1088 = vst.msk [vmem:[%s3 + $0x1d8] sm:$0xff] %vm1028, %v1009
  %1089 = vst.msk [vmem:[%s3 + $0x1e0] sm:$0xff] %vm1028, %v1014
  %1090 = vst.msk [vmem:[%s3 + $0x1e8] sm:$0xff] %vm1028, %v1017
  %1091 = vst.msk [vmem:[%s3 + $0x1f0] sm:$0xff] %vm1028, %v1022
  %1092 = vst.msk [vmem:[%s3 + $0x1f8] sm:$0xff] %vm1028, %v1025
  %v1093 = vsel %vm1028, %v774, 0.0
  %1094 = vadd.xlane.f32.xlu0 %v1093
  %v1095 = vpop.xlane.xlu0 %1094
  %v1096 = vsel %vm1028, %v777, 0.0
  %1097 = vadd.xlane.f32.xlu0 %v1096
  %v1098 = vpop.xlane.xlu0 %1097
  %v1099 = vsel %vm1028, %v782, 0.0
  %1100 = vadd.xlane.f32.xlu0 %v1099
  %v1101 = vpop.xlane.xlu0 %1100
  %v1102 = vsel %vm1028, %v785, 0.0
  %1103 = vadd.xlane.f32.xlu0 %v1102
  %v1104 = vpop.xlane.xlu0 %1103
  %v1105 = vsel %vm1028, %v790, 0.0
  %1106 = vadd.xlane.f32.xlu0 %v1105
  %v1107 = vpop.xlane.xlu0 %1106
  %v1108 = vsel %vm1028, %v793, 0.0
  %1109 = vadd.xlane.f32.xlu0 %v1108
  %v1110 = vpop.xlane.xlu0 %1109
  %v1111 = vsel %vm1028, %v798, 0.0
  %1112 = vadd.xlane.f32.xlu0 %v1111
  %v1113 = vpop.xlane.xlu0 %1112
  %v1114 = vsel %vm1028, %v801, 0.0
  %1115 = vadd.xlane.f32.xlu0 %v1114
  %v1116 = vpop.xlane.xlu0 %1115
  %v1117 = vsel %vm1028, %v806, 0.0
  %1118 = vadd.xlane.f32.xlu0 %v1117
  %v1119 = vpop.xlane.xlu0 %1118
  %v1120 = vsel %vm1028, %v809, 0.0
  %1121 = vadd.xlane.f32.xlu0 %v1120
  %v1122 = vpop.xlane.xlu0 %1121
  %v1123 = vsel %vm1028, %v814, 0.0
  %1124 = vadd.xlane.f32.xlu0 %v1123
  %v1125 = vpop.xlane.xlu0 %1124
  %v1126 = vsel %vm1028, %v817, 0.0
  %1127 = vadd.xlane.f32.xlu0 %v1126
  %v1128 = vpop.xlane.xlu0 %1127
  %v1129 = vsel %vm1028, %v822, 0.0
  %1130 = vadd.xlane.f32.xlu0 %v1129
  %v1131 = vpop.xlane.xlu0 %1130
  %v1132 = vsel %vm1028, %v825, 0.0
  %1133 = vadd.xlane.f32.xlu0 %v1132
  %v1134 = vpop.xlane.xlu0 %1133
  %v1135 = vsel %vm1028, %v830, 0.0
  %1136 = vadd.xlane.f32.xlu0 %v1135
  %v1137 = vpop.xlane.xlu0 %1136
  %v1138 = vsel %vm1028, %v833, 0.0
  %1139 = vadd.xlane.f32.xlu0 %v1138
  %v1140 = vpop.xlane.xlu0 %1139
  %v1141 = vsel %vm1028, %v838, 0.0
  %1142 = vadd.xlane.f32.xlu0 %v1141
  %v1143 = vpop.xlane.xlu0 %1142
  %v1144 = vsel %vm1028, %v841, 0.0
  %1145 = vadd.xlane.f32.xlu0 %v1144
  %v1146 = vpop.xlane.xlu0 %1145
  %v1147 = vsel %vm1028, %v846, 0.0
  %1148 = vadd.xlane.f32.xlu0 %v1147
  %v1149 = vpop.xlane.xlu0 %1148
  %v1150 = vsel %vm1028, %v849, 0.0
  %1151 = vadd.xlane.f32.xlu0 %v1150
  %v1152 = vpop.xlane.xlu0 %1151
  %v1153 = vsel %vm1028, %v854, 0.0
  %1154 = vadd.xlane.f32.xlu0 %v1153
  %v1155 = vpop.xlane.xlu0 %1154
  %v1156 = vsel %vm1028, %v857, 0.0
  %1157 = vadd.xlane.f32.xlu0 %v1156
  %v1158 = vpop.xlane.xlu0 %1157
  %v1159 = vsel %vm1028, %v862, 0.0
  %1160 = vadd.xlane.f32.xlu0 %v1159
  %v1161 = vpop.xlane.xlu0 %1160
  %v1162 = vsel %vm1028, %v865, 0.0
  %1163 = vadd.xlane.f32.xlu0 %v1162
  %v1164 = vpop.xlane.xlu0 %1163
  %v1165 = vsel %vm1028, %v870, 0.0
  %1166 = vadd.xlane.f32.xlu0 %v1165
  %v1167 = vpop.xlane.xlu0 %1166
  %v1168 = vsel %vm1028, %v873, 0.0
  %1169 = vadd.xlane.f32.xlu0 %v1168
  %v1170 = vpop.xlane.xlu0 %1169
  %v1171 = vsel %vm1028, %v878, 0.0
  %1172 = vadd.xlane.f32.xlu0 %v1171
  %v1173 = vpop.xlane.xlu0 %1172
  %v1174 = vsel %vm1028, %v881, 0.0
  %1175 = vadd.xlane.f32.xlu0 %v1174
  %v1176 = vpop.xlane.xlu0 %1175
  %v1177 = vsel %vm1028, %v886, 0.0
  %1178 = vadd.xlane.f32.xlu0 %v1177
  %v1179 = vpop.xlane.xlu0 %1178
  %v1180 = vsel %vm1028, %v889, 0.0
  %1181 = vadd.xlane.f32.xlu0 %v1180
  %v1182 = vpop.xlane.xlu0 %1181
  %v1183 = vsel %vm1028, %v894, 0.0
  %1184 = vadd.xlane.f32.xlu0 %v1183
  %v1185 = vpop.xlane.xlu0 %1184
  %v1186 = vsel %vm1028, %v897, 0.0
  %1187 = vadd.xlane.f32.xlu0 %v1186
  %v1188 = vpop.xlane.xlu0 %1187
  %v1189 = vsel %vm1028, %v902, 0.0
  %1190 = vadd.xlane.f32.xlu0 %v1189
  %v1191 = vpop.xlane.xlu0 %1190
  %v1192 = vsel %vm1028, %v905, 0.0
  %1193 = vadd.xlane.f32.xlu0 %v1192
  %v1194 = vpop.xlane.xlu0 %1193
  %v1195 = vsel %vm1028, %v910, 0.0
  %1196 = vadd.xlane.f32.xlu0 %v1195
  %v1197 = vpop.xlane.xlu0 %1196
  %v1198 = vsel %vm1028, %v913, 0.0
  %1199 = vadd.xlane.f32.xlu0 %v1198
  %v1200 = vpop.xlane.xlu0 %1199
  %v1201 = vsel %vm1028, %v918, 0.0
  %1202 = vadd.xlane.f32.xlu0 %v1201
  %v1203 = vpop.xlane.xlu0 %1202
  %v1204 = vsel %vm1028, %v921, 0.0
  %1205 = vadd.xlane.f32.xlu0 %v1204
  %v1206 = vpop.xlane.xlu0 %1205
  %v1207 = vsel %vm1028, %v926, 0.0
  %1208 = vadd.xlane.f32.xlu0 %v1207
  %v1209 = vpop.xlane.xlu0 %1208
  %v1210 = vsel %vm1028, %v929, 0.0
  %1211 = vadd.xlane.f32.xlu0 %v1210
  %v1212 = vpop.xlane.xlu0 %1211
  %v1213 = vsel %vm1028, %v934, 0.0
  %1214 = vadd.xlane.f32.xlu0 %v1213
  %v1215 = vpop.xlane.xlu0 %1214
  %v1216 = vsel %vm1028, %v937, 0.0
  %1217 = vadd.xlane.f32.xlu0 %v1216
  %v1218 = vpop.xlane.xlu0 %1217
  %v1219 = vsel %vm1028, %v942, 0.0
  %1220 = vadd.xlane.f32.xlu0 %v1219
  %v1221 = vpop.xlane.xlu0 %1220
  %v1222 = vsel %vm1028, %v945, 0.0
  %1223 = vadd.xlane.f32.xlu0 %v1222
  %v1224 = vpop.xlane.xlu0 %1223
  %v1225 = vsel %vm1028, %v950, 0.0
  %1226 = vadd.xlane.f32.xlu0 %v1225
  %v1227 = vpop.xlane.xlu0 %1226
  %v1228 = vsel %vm1028, %v953, 0.0
  %1229 = vadd.xlane.f32.xlu0 %v1228
  %v1230 = vpop.xlane.xlu0 %1229
  %v1231 = vsel %vm1028, %v958, 0.0
  %1232 = vadd.xlane.f32.xlu0 %v1231
  %v1233 = vpop.xlane.xlu0 %1232
  %v1234 = vsel %vm1028, %v961, 0.0
  %1235 = vadd.xlane.f32.xlu0 %v1234
  %v1236 = vpop.xlane.xlu0 %1235
  %v1237 = vsel %vm1028, %v966, 0.0
  %1238 = vadd.xlane.f32.xlu0 %v1237
  %v1239 = vpop.xlane.xlu0 %1238
  %v1240 = vsel %vm1028, %v969, 0.0
  %1241 = vadd.xlane.f32.xlu0 %v1240
  %v1242 = vpop.xlane.xlu0 %1241
  %v1243 = vsel %vm1028, %v974, 0.0
  %1244 = vadd.xlane.f32.xlu0 %v1243
  %v1245 = vpop.xlane.xlu0 %1244
  %v1246 = vsel %vm1028, %v977, 0.0
  %1247 = vadd.xlane.f32.xlu0 %v1246
  %v1248 = vpop.xlane.xlu0 %1247
  %v1249 = vsel %vm1028, %v982, 0.0
  %1250 = vadd.xlane.f32.xlu0 %v1249
  %v1251 = vpop.xlane.xlu0 %1250
  %v1252 = vsel %vm1028, %v985, 0.0
  %1253 = vadd.xlane.f32.xlu0 %v1252
  %v1254 = vpop.xlane.xlu0 %1253
  %v1255 = vsel %vm1028, %v990, 0.0
  %1256 = vadd.xlane.f32.xlu0 %v1255
  %v1257 = vpop.xlane.xlu0 %1256
  %v1258 = vsel %vm1028, %v993, 0.0
  %1259 = vadd.xlane.f32.xlu0 %v1258
  %v1260 = vpop.xlane.xlu0 %1259
  %v1261 = vsel %vm1028, %v998, 0.0
  %1262 = vadd.xlane.f32.xlu0 %v1261
  %v1263 = vpop.xlane.xlu0 %1262
  %v1264 = vsel %vm1028, %v1001, 0.0
  %1265 = vadd.xlane.f32.xlu0 %v1264
  %v1266 = vpop.xlane.xlu0 %1265
  %v1267 = vsel %vm1028, %v1006, 0.0
  %1268 = vadd.xlane.f32.xlu0 %v1267
  %v1269 = vpop.xlane.xlu0 %1268
  %v1270 = vsel %vm1028, %v1009, 0.0
  %1271 = vadd.xlane.f32.xlu0 %v1270
  %v1272 = vpop.xlane.xlu0 %1271
  %v1273 = vsel %vm1028, %v1014, 0.0
  %1274 = vadd.xlane.f32.xlu0 %v1273
  %v1275 = vpop.xlane.xlu0 %1274
  %v1276 = vsel %vm1028, %v1017, 0.0
  %1277 = vadd.xlane.f32.xlu0 %v1276
  %v1278 = vpop.xlane.xlu0 %1277
  %v1279 = vsel %vm1028, %v1022, 0.0
  %1280 = vadd.xlane.f32.xlu0 %v1279
  %v1281 = vpop.xlane.xlu0 %1280
  %v1282 = vsel %vm1028, %v1025, 0.0
  %1283 = vadd.xlane.f32.xlu0 %v1282
  %v1284 = vpop.xlane.xlu0 %1283
  %vm1285 = vcmask 7168
  %1286 = vst.msk [vmem:[%s4] sm:$0xff] %vm1285, %v1095
  %1287 = vst.msk [vmem:[%s4 + $0x8] sm:$0xff] %vm1285, %v1098
  %1288 = vst.msk [vmem:[%s4 + $0x10] sm:$0xff] %vm1285, %v1101
  %1289 = vst.msk [vmem:[%s4 + $0x18] sm:$0xff] %vm1285, %v1104
  %1290 = vst.msk [vmem:[%s4 + $0x20] sm:$0xff] %vm1285, %v1107
  %1291 = vst.msk [vmem:[%s4 + $0x28] sm:$0xff] %vm1285, %v1110
  %1292 = vst.msk [vmem:[%s4 + $0x30] sm:$0xff] %vm1285, %v1113
  %1293 = vst.msk [vmem:[%s4 + $0x38] sm:$0xff] %vm1285, %v1116
  %1294 = vst.msk [vmem:[%s4 + $0x40] sm:$0xff] %vm1285, %v1119
  %1295 = vst.msk [vmem:[%s4 + $0x48] sm:$0xff] %vm1285, %v1122
  %1296 = vst.msk [vmem:[%s4 + $0x50] sm:$0xff] %vm1285, %v1125
  %1297 = vst.msk [vmem:[%s4 + $0x58] sm:$0xff] %vm1285, %v1128
  %1298 = vst.msk [vmem:[%s4 + $0x60] sm:$0xff] %vm1285, %v1131
  %1299 = vst.msk [vmem:[%s4 + $0x68] sm:$0xff] %vm1285, %v1134
  %1300 = vst.msk [vmem:[%s4 + $0x70] sm:$0xff] %vm1285, %v1137
  %1301 = vst.msk [vmem:[%s4 + $0x78] sm:$0xff] %vm1285, %v1140
  %1302 = vst.msk [vmem:[%s4 + $0x80] sm:$0xff] %vm1285, %v1143
  %1303 = vst.msk [vmem:[%s4 + $0x88] sm:$0xff] %vm1285, %v1146
  %1304 = vst.msk [vmem:[%s4 + $0x90] sm:$0xff] %vm1285, %v1149
  %1305 = vst.msk [vmem:[%s4 + $0x98] sm:$0xff] %vm1285, %v1152
  %1306 = vst.msk [vmem:[%s4 + $0xa0] sm:$0xff] %vm1285, %v1155
  %1307 = vst.msk [vmem:[%s4 + $0xa8] sm:$0xff] %vm1285, %v1158
  %1308 = vst.msk [vmem:[%s4 + $0xb0] sm:$0xff] %vm1285, %v1161
  %1309 = vst.msk [vmem:[%s4 + $0xb8] sm:$0xff] %vm1285, %v1164
  %1310 = vst.msk [vmem:[%s4 + $0xc0] sm:$0xff] %vm1285, %v1167
  %1311 = vst.msk [vmem:[%s4 + $0xc8] sm:$0xff] %vm1285, %v1170
  %1312 = vst.msk [vmem:[%s4 + $0xd0] sm:$0xff] %vm1285, %v1173
  %1313 = vst.msk [vmem:[%s4 + $0xd8] sm:$0xff] %vm1285, %v1176
  %1314 = vst.msk [vmem:[%s4 + $0xe0] sm:$0xff] %vm1285, %v1179
  %1315 = vst.msk [vmem:[%s4 + $0xe8] sm:$0xff] %vm1285, %v1182
  %1316 = vst.msk [vmem:[%s4 + $0xf0] sm:$0xff] %vm1285, %v1185
  %1317 = vst.msk [vmem:[%s4 + $0xf8] sm:$0xff] %vm1285, %v1188
  %1318 = vst.msk [vmem:[%s4 + $0x100] sm:$0xff] %vm1285, %v1191
  %1319 = vst.msk [vmem:[%s4 + $0x108] sm:$0xff] %vm1285, %v1194
  %1320 = vst.msk [vmem:[%s4 + $0x110] sm:$0xff] %vm1285, %v1197
  %1321 = vst.msk [vmem:[%s4 + $0x118] sm:$0xff] %vm1285, %v1200
  %1322 = vst.msk [vmem:[%s4 + $0x120] sm:$0xff] %vm1285, %v1203
  %1323 = vst.msk [vmem:[%s4 + $0x128] sm:$0xff] %vm1285, %v1206
  %1324 = vst.msk [vmem:[%s4 + $0x130] sm:$0xff] %vm1285, %v1209
  %1325 = vst.msk [vmem:[%s4 + $0x138] sm:$0xff] %vm1285, %v1212
  %1326 = vst.msk [vmem:[%s4 + $0x140] sm:$0xff] %vm1285, %v1215
  %1327 = vst.msk [vmem:[%s4 + $0x148] sm:$0xff] %vm1285, %v1218
  %1328 = vst.msk [vmem:[%s4 + $0x150] sm:$0xff] %vm1285, %v1221
  %1329 = vst.msk [vmem:[%s4 + $0x158] sm:$0xff] %vm1285, %v1224
  %1330 = vst.msk [vmem:[%s4 + $0x160] sm:$0xff] %vm1285, %v1227
  %1331 = vst.msk [vmem:[%s4 + $0x168] sm:$0xff] %vm1285, %v1230
  %1332 = vst.msk [vmem:[%s4 + $0x170] sm:$0xff] %vm1285, %v1233
  %1333 = vst.msk [vmem:[%s4 + $0x178] sm:$0xff] %vm1285, %v1236
  %1334 = vst.msk [vmem:[%s4 + $0x180] sm:$0xff] %vm1285, %v1239
  %1335 = vst.msk [vmem:[%s4 + $0x188] sm:$0xff] %vm1285, %v1242
  %1336 = vst.msk [vmem:[%s4 + $0x190] sm:$0xff] %vm1285, %v1245
  %1337 = vst.msk [vmem:[%s4 + $0x198] sm:$0xff] %vm1285, %v1248
  %1338 = vst.msk [vmem:[%s4 + $0x1a0] sm:$0xff] %vm1285, %v1251
  %1339 = vst.msk [vmem:[%s4 + $0x1a8] sm:$0xff] %vm1285, %v1254
  %1340 = vst.msk [vmem:[%s4 + $0x1b0] sm:$0xff] %vm1285, %v1257
  %1341 = vst.msk [vmem:[%s4 + $0x1b8] sm:$0xff] %vm1285, %v1260
  %1342 = vst.msk [vmem:[%s4 + $0x1c0] sm:$0xff] %vm1285, %v1263
  %1343 = vst.msk [vmem:[%s4 + $0x1c8] sm:$0xff] %vm1285, %v1266
  %1344 = vst.msk [vmem:[%s4 + $0x1d0] sm:$0xff] %vm1285, %v1269
  %1345 = vst.msk [vmem:[%s4 + $0x1d8] sm:$0xff] %vm1285, %v1272
  %1346 = vst.msk [vmem:[%s4 + $0x1e0] sm:$0xff] %vm1285, %v1275
  %1347 = vst.msk [vmem:[%s4 + $0x1e8] sm:$0xff] %vm1285, %v1278
  %1348 = vst.msk [vmem:[%s4 + $0x1f0] sm:$0xff] %vm1285, %v1281
  %1349 = vst.msk [vmem:[%s4 + $0x1f8] sm:$0xff] %vm1285, %v1284
  %v1350 = vmul.f32 %v774, %v774
  %v1351 = vmul.f32 %v777, %v777
  %v1352 = vmul.f32 %v782, %v782
  %v1353 = vmul.f32 %v785, %v785
  %v1354 = vmul.f32 %v790, %v790
  %v1355 = vmul.f32 %v793, %v793
  %v1356 = vmul.f32 %v798, %v798
  %v1357 = vmul.f32 %v801, %v801
  %v1358 = vmul.f32 %v806, %v806
  %v1359 = vmul.f32 %v809, %v809
  %v1360 = vmul.f32 %v814, %v814
  %v1361 = vmul.f32 %v817, %v817
  %v1362 = vmul.f32 %v822, %v822
  %v1363 = vmul.f32 %v825, %v825
  %v1364 = vmul.f32 %v830, %v830
  %v1365 = vmul.f32 %v833, %v833
  %v1366 = vmul.f32 %v838, %v838
  %v1367 = vmul.f32 %v841, %v841
  %v1368 = vmul.f32 %v846, %v846
  %v1369 = vmul.f32 %v849, %v849
  %v1370 = vmul.f32 %v854, %v854
  %v1371 = vmul.f32 %v857, %v857
  %v1372 = vmul.f32 %v862, %v862
  %v1373 = vmul.f32 %v865, %v865
  %v1374 = vmul.f32 %v870, %v870
  %v1375 = vmul.f32 %v873, %v873
  %v1376 = vmul.f32 %v878, %v878
  %v1377 = vmul.f32 %v881, %v881
  %v1378 = vmul.f32 %v886, %v886
  %v1379 = vmul.f32 %v889, %v889
  %v1380 = vmul.f32 %v894, %v894
  %v1381 = vmul.f32 %v897, %v897
  %v1382 = vmul.f32 %v902, %v902
  %v1383 = vmul.f32 %v905, %v905
  %v1384 = vmul.f32 %v910, %v910
  %v1385 = vmul.f32 %v913, %v913
  %v1386 = vmul.f32 %v918, %v918
  %v1387 = vmul.f32 %v921, %v921
  %v1388 = vmul.f32 %v926, %v926
  %v1389 = vmul.f32 %v929, %v929
  %v1390 = vmul.f32 %v934, %v934
  %v1391 = vmul.f32 %v937, %v937
  %v1392 = vmul.f32 %v942, %v942
  %v1393 = vmul.f32 %v945, %v945
  %v1394 = vmul.f32 %v950, %v950
  %v1395 = vmul.f32 %v953, %v953
  %v1396 = vmul.f32 %v958, %v958
  %v1397 = vmul.f32 %v961, %v961
  %v1398 = vmul.f32 %v966, %v966
  %v1399 = vmul.f32 %v969, %v969
  %v1400 = vmul.f32 %v974, %v974
  %v1401 = vmul.f32 %v977, %v977
  %v1402 = vmul.f32 %v982, %v982
  %v1403 = vmul.f32 %v985, %v985
  %v1404 = vmul.f32 %v990, %v990
  %v1405 = vmul.f32 %v993, %v993
  %v1406 = vmul.f32 %v998, %v998
  %v1407 = vmul.f32 %v1001, %v1001
  %v1408 = vmul.f32 %v1006, %v1006
  %v1409 = vmul.f32 %v1009, %v1009
  %v1410 = vmul.f32 %v1014, %v1014
  %v1411 = vmul.f32 %v1017, %v1017
  %v1412 = vmul.f32 %v1022, %v1022
  %v1413 = vmul.f32 %v1025, %v1025
  %v1414 = vsel %vm1028, %v1350, 0.0
  %1415 = vadd.xlane.f32.xlu0 %v1414
  %v1416 = vpop.xlane.xlu0 %1415
  %v1417 = vsel %vm1028, %v1351, 0.0
  %1418 = vadd.xlane.f32.xlu0 %v1417
  %v1419 = vpop.xlane.xlu0 %1418
  %v1420 = vsel %vm1028, %v1352, 0.0
  %1421 = vadd.xlane.f32.xlu0 %v1420
  %v1422 = vpop.xlane.xlu0 %1421
  %v1423 = vsel %vm1028, %v1353, 0.0
  %1424 = vadd.xlane.f32.xlu0 %v1423
  %v1425 = vpop.xlane.xlu0 %1424
  %v1426 = vsel %vm1028, %v1354, 0.0
  %1427 = vadd.xlane.f32.xlu0 %v1426
  %v1428 = vpop.xlane.xlu0 %1427
  %v1429 = vsel %vm1028, %v1355, 0.0
  %1430 = vadd.xlane.f32.xlu0 %v1429
  %v1431 = vpop.xlane.xlu0 %1430
  %v1432 = vsel %vm1028, %v1356, 0.0
  %1433 = vadd.xlane.f32.xlu0 %v1432
  %v1434 = vpop.xlane.xlu0 %1433
  %v1435 = vsel %vm1028, %v1357, 0.0
  %1436 = vadd.xlane.f32.xlu0 %v1435
  %v1437 = vpop.xlane.xlu0 %1436
  %v1438 = vsel %vm1028, %v1358, 0.0
  %1439 = vadd.xlane.f32.xlu0 %v1438
  %v1440 = vpop.xlane.xlu0 %1439
  %v1441 = vsel %vm1028, %v1359, 0.0
  %1442 = vadd.xlane.f32.xlu0 %v1441
  %v1443 = vpop.xlane.xlu0 %1442
  %v1444 = vsel %vm1028, %v1360, 0.0
  %1445 = vadd.xlane.f32.xlu0 %v1444
  %v1446 = vpop.xlane.xlu0 %1445
  %v1447 = vsel %vm1028, %v1361, 0.0
  %1448 = vadd.xlane.f32.xlu0 %v1447
  %v1449 = vpop.xlane.xlu0 %1448
  %v1450 = vsel %vm1028, %v1362, 0.0
  %1451 = vadd.xlane.f32.xlu0 %v1450
  %v1452 = vpop.xlane.xlu0 %1451
  %v1453 = vsel %vm1028, %v1363, 0.0
  %1454 = vadd.xlane.f32.xlu0 %v1453
  %v1455 = vpop.xlane.xlu0 %1454
  %v1456 = vsel %vm1028, %v1364, 0.0
  %1457 = vadd.xlane.f32.xlu0 %v1456
  %v1458 = vpop.xlane.xlu0 %1457
  %v1459 = vsel %vm1028, %v1365, 0.0
  %1460 = vadd.xlane.f32.xlu0 %v1459
  %v1461 = vpop.xlane.xlu0 %1460
  %v1462 = vsel %vm1028, %v1366, 0.0
  %1463 = vadd.xlane.f32.xlu0 %v1462
  %v1464 = vpop.xlane.xlu0 %1463
  %v1465 = vsel %vm1028, %v1367, 0.0
  %1466 = vadd.xlane.f32.xlu0 %v1465
  %v1467 = vpop.xlane.xlu0 %1466
  %v1468 = vsel %vm1028, %v1368, 0.0
  %1469 = vadd.xlane.f32.xlu0 %v1468
  %v1470 = vpop.xlane.xlu0 %1469
  %v1471 = vsel %vm1028, %v1369, 0.0
  %1472 = vadd.xlane.f32.xlu0 %v1471
  %v1473 = vpop.xlane.xlu0 %1472
  %v1474 = vsel %vm1028, %v1370, 0.0
  %1475 = vadd.xlane.f32.xlu0 %v1474
  %v1476 = vpop.xlane.xlu0 %1475
  %v1477 = vsel %vm1028, %v1371, 0.0
  %1478 = vadd.xlane.f32.xlu0 %v1477
  %v1479 = vpop.xlane.xlu0 %1478
  %v1480 = vsel %vm1028, %v1372, 0.0
  %1481 = vadd.xlane.f32.xlu0 %v1480
  %v1482 = vpop.xlane.xlu0 %1481
  %v1483 = vsel %vm1028, %v1373, 0.0
  %1484 = vadd.xlane.f32.xlu0 %v1483
  %v1485 = vpop.xlane.xlu0 %1484
  %v1486 = vsel %vm1028, %v1374, 0.0
  %1487 = vadd.xlane.f32.xlu0 %v1486
  %v1488 = vpop.xlane.xlu0 %1487
  %v1489 = vsel %vm1028, %v1375, 0.0
  %1490 = vadd.xlane.f32.xlu0 %v1489
  %v1491 = vpop.xlane.xlu0 %1490
  %v1492 = vsel %vm1028, %v1376, 0.0
  %1493 = vadd.xlane.f32.xlu0 %v1492
  %v1494 = vpop.xlane.xlu0 %1493
  %v1495 = vsel %vm1028, %v1377, 0.0
  %1496 = vadd.xlane.f32.xlu0 %v1495
  %v1497 = vpop.xlane.xlu0 %1496
  %v1498 = vsel %vm1028, %v1378, 0.0
  %1499 = vadd.xlane.f32.xlu0 %v1498
  %v1500 = vpop.xlane.xlu0 %1499
  %v1501 = vsel %vm1028, %v1379, 0.0
  %1502 = vadd.xlane.f32.xlu0 %v1501
  %v1503 = vpop.xlane.xlu0 %1502
  %v1504 = vsel %vm1028, %v1380, 0.0
  %1505 = vadd.xlane.f32.xlu0 %v1504
  %v1506 = vpop.xlane.xlu0 %1505
  %v1507 = vsel %vm1028, %v1381, 0.0
  %1508 = vadd.xlane.f32.xlu0 %v1507
  %v1509 = vpop.xlane.xlu0 %1508
  %v1510 = vsel %vm1028, %v1382, 0.0
  %1511 = vadd.xlane.f32.xlu0 %v1510
  %v1512 = vpop.xlane.xlu0 %1511
  %v1513 = vsel %vm1028, %v1383, 0.0
  %1514 = vadd.xlane.f32.xlu0 %v1513
  %v1515 = vpop.xlane.xlu0 %1514
  %v1516 = vsel %vm1028, %v1384, 0.0
  %1517 = vadd.xlane.f32.xlu0 %v1516
  %v1518 = vpop.xlane.xlu0 %1517
  %v1519 = vsel %vm1028, %v1385, 0.0
  %1520 = vadd.xlane.f32.xlu0 %v1519
  %v1521 = vpop.xlane.xlu0 %1520
  %v1522 = vsel %vm1028, %v1386, 0.0
  %1523 = vadd.xlane.f32.xlu0 %v1522
  %v1524 = vpop.xlane.xlu0 %1523
  %v1525 = vsel %vm1028, %v1387, 0.0
  %1526 = vadd.xlane.f32.xlu0 %v1525
  %v1527 = vpop.xlane.xlu0 %1526
  %v1528 = vsel %vm1028, %v1388, 0.0
  %1529 = vadd.xlane.f32.xlu0 %v1528
  %v1530 = vpop.xlane.xlu0 %1529
  %v1531 = vsel %vm1028, %v1389, 0.0
  %1532 = vadd.xlane.f32.xlu0 %v1531
  %v1533 = vpop.xlane.xlu0 %1532
  %v1534 = vsel %vm1028, %v1390, 0.0
  %1535 = vadd.xlane.f32.xlu0 %v1534
  %v1536 = vpop.xlane.xlu0 %1535
  %v1537 = vsel %vm1028, %v1391, 0.0
  %1538 = vadd.xlane.f32.xlu0 %v1537
  %v1539 = vpop.xlane.xlu0 %1538
  %v1540 = vsel %vm1028, %v1392, 0.0
  %1541 = vadd.xlane.f32.xlu0 %v1540
  %v1542 = vpop.xlane.xlu0 %1541
  %v1543 = vsel %vm1028, %v1393, 0.0
  %1544 = vadd.xlane.f32.xlu0 %v1543
  %v1545 = vpop.xlane.xlu0 %1544
  %v1546 = vsel %vm1028, %v1394, 0.0
  %1547 = vadd.xlane.f32.xlu0 %v1546
  %v1548 = vpop.xlane.xlu0 %1547
  %v1549 = vsel %vm1028, %v1395, 0.0
  %1550 = vadd.xlane.f32.xlu0 %v1549
  %v1551 = vpop.xlane.xlu0 %1550
  %v1552 = vsel %vm1028, %v1396, 0.0
  %1553 = vadd.xlane.f32.xlu0 %v1552
  %v1554 = vpop.xlane.xlu0 %1553
  %v1555 = vsel %vm1028, %v1397, 0.0
  %1556 = vadd.xlane.f32.xlu0 %v1555
  %v1557 = vpop.xlane.xlu0 %1556
  %v1558 = vsel %vm1028, %v1398, 0.0
  %1559 = vadd.xlane.f32.xlu0 %v1558
  %v1560 = vpop.xlane.xlu0 %1559
  %v1561 = vsel %vm1028, %v1399, 0.0
  %1562 = vadd.xlane.f32.xlu0 %v1561
  %v1563 = vpop.xlane.xlu0 %1562
  %v1564 = vsel %vm1028, %v1400, 0.0
  %1565 = vadd.xlane.f32.xlu0 %v1564
  %v1566 = vpop.xlane.xlu0 %1565
  %v1567 = vsel %vm1028, %v1401, 0.0
  %1568 = vadd.xlane.f32.xlu0 %v1567
  %v1569 = vpop.xlane.xlu0 %1568
  %v1570 = vsel %vm1028, %v1402, 0.0
  %1571 = vadd.xlane.f32.xlu0 %v1570
  %v1572 = vpop.xlane.xlu0 %1571
  %v1573 = vsel %vm1028, %v1403, 0.0
  %1574 = vadd.xlane.f32.xlu0 %v1573
  %v1575 = vpop.xlane.xlu0 %1574
  %v1576 = vsel %vm1028, %v1404, 0.0
  %1577 = vadd.xlane.f32.xlu0 %v1576
  %v1578 = vpop.xlane.xlu0 %1577
  %v1579 = vsel %vm1028, %v1405, 0.0
  %1580 = vadd.xlane.f32.xlu0 %v1579
  %v1581 = vpop.xlane.xlu0 %1580
  %v1582 = vsel %vm1028, %v1406, 0.0
  %1583 = vadd.xlane.f32.xlu0 %v1582
  %v1584 = vpop.xlane.xlu0 %1583
  %v1585 = vsel %vm1028, %v1407, 0.0
  %1586 = vadd.xlane.f32.xlu0 %v1585
  %v1587 = vpop.xlane.xlu0 %1586
  %v1588 = vsel %vm1028, %v1408, 0.0
  %1589 = vadd.xlane.f32.xlu0 %v1588
  %v1590 = vpop.xlane.xlu0 %1589
  %v1591 = vsel %vm1028, %v1409, 0.0
  %1592 = vadd.xlane.f32.xlu0 %v1591
  %v1593 = vpop.xlane.xlu0 %1592
  %v1594 = vsel %vm1028, %v1410, 0.0
  %1595 = vadd.xlane.f32.xlu0 %v1594
  %v1596 = vpop.xlane.xlu0 %1595
  %v1597 = vsel %vm1028, %v1411, 0.0
  %1598 = vadd.xlane.f32.xlu0 %v1597
  %v1599 = vpop.xlane.xlu0 %1598
  %v1600 = vsel %vm1028, %v1412, 0.0
  %1601 = vadd.xlane.f32.xlu0 %v1600
  %v1602 = vpop.xlane.xlu0 %1601
  %v1603 = vsel %vm1028, %v1413, 0.0
  %1604 = vadd.xlane.f32.xlu0 %v1603
  %v1605 = vpop.xlane.xlu0 %1604
  %1606 = vst.msk [vmem:[%s5] sm:$0xff] %vm1285, %v1416
  %1607 = vst.msk [vmem:[%s5 + $0x8] sm:$0xff] %vm1285, %v1419
  %1608 = vst.msk [vmem:[%s5 + $0x10] sm:$0xff] %vm1285, %v1422
  %1609 = vst.msk [vmem:[%s5 + $0x18] sm:$0xff] %vm1285, %v1425
  %1610 = vst.msk [vmem:[%s5 + $0x20] sm:$0xff] %vm1285, %v1428
  %1611 = vst.msk [vmem:[%s5 + $0x28] sm:$0xff] %vm1285, %v1431
  %1612 = vst.msk [vmem:[%s5 + $0x30] sm:$0xff] %vm1285, %v1434
  %1613 = vst.msk [vmem:[%s5 + $0x38] sm:$0xff] %vm1285, %v1437
  %1614 = vst.msk [vmem:[%s5 + $0x40] sm:$0xff] %vm1285, %v1440
  %1615 = vst.msk [vmem:[%s5 + $0x48] sm:$0xff] %vm1285, %v1443
  %1616 = vst.msk [vmem:[%s5 + $0x50] sm:$0xff] %vm1285, %v1446
  %1617 = vst.msk [vmem:[%s5 + $0x58] sm:$0xff] %vm1285, %v1449
  %1618 = vst.msk [vmem:[%s5 + $0x60] sm:$0xff] %vm1285, %v1452
  %1619 = vst.msk [vmem:[%s5 + $0x68] sm:$0xff] %vm1285, %v1455
  %1620 = vst.msk [vmem:[%s5 + $0x70] sm:$0xff] %vm1285, %v1458
  %1621 = vst.msk [vmem:[%s5 + $0x78] sm:$0xff] %vm1285, %v1461
  %1622 = vst.msk [vmem:[%s5 + $0x80] sm:$0xff] %vm1285, %v1464
  %1623 = vst.msk [vmem:[%s5 + $0x88] sm:$0xff] %vm1285, %v1467
  %1624 = vst.msk [vmem:[%s5 + $0x90] sm:$0xff] %vm1285, %v1470
  %1625 = vst.msk [vmem:[%s5 + $0x98] sm:$0xff] %vm1285, %v1473
  %1626 = vst.msk [vmem:[%s5 + $0xa0] sm:$0xff] %vm1285, %v1476
  %1627 = vst.msk [vmem:[%s5 + $0xa8] sm:$0xff] %vm1285, %v1479
  %1628 = vst.msk [vmem:[%s5 + $0xb0] sm:$0xff] %vm1285, %v1482
  %1629 = vst.msk [vmem:[%s5 + $0xb8] sm:$0xff] %vm1285, %v1485
  %1630 = vst.msk [vmem:[%s5 + $0xc0] sm:$0xff] %vm1285, %v1488
  %1631 = vst.msk [vmem:[%s5 + $0xc8] sm:$0xff] %vm1285, %v1491
  %1632 = vst.msk [vmem:[%s5 + $0xd0] sm:$0xff] %vm1285, %v1494
  %1633 = vst.msk [vmem:[%s5 + $0xd8] sm:$0xff] %vm1285, %v1497
  %1634 = vst.msk [vmem:[%s5 + $0xe0] sm:$0xff] %vm1285, %v1500
  %1635 = vst.msk [vmem:[%s5 + $0xe8] sm:$0xff] %vm1285, %v1503
  %1636 = vst.msk [vmem:[%s5 + $0xf0] sm:$0xff] %vm1285, %v1506
  %1637 = vst.msk [vmem:[%s5 + $0xf8] sm:$0xff] %vm1285, %v1509
  %1638 = vst.msk [vmem:[%s5 + $0x100] sm:$0xff] %vm1285, %v1512
  %1639 = vst.msk [vmem:[%s5 + $0x108] sm:$0xff] %vm1285, %v1515
  %1640 = vst.msk [vmem:[%s5 + $0x110] sm:$0xff] %vm1285, %v1518
  %1641 = vst.msk [vmem:[%s5 + $0x118] sm:$0xff] %vm1285, %v1521
  %1642 = vst.msk [vmem:[%s5 + $0x120] sm:$0xff] %vm1285, %v1524
  %1643 = vst.msk [vmem:[%s5 + $0x128] sm:$0xff] %vm1285, %v1527
  %1644 = vst.msk [vmem:[%s5 + $0x130] sm:$0xff] %vm1285, %v1530
  %1645 = vst.msk [vmem:[%s5 + $0x138] sm:$0xff] %vm1285, %v1533
  %1646 = vst.msk [vmem:[%s5 + $0x140] sm:$0xff] %vm1285, %v1536
  %1647 = vst.msk [vmem:[%s5 + $0x148] sm:$0xff] %vm1285, %v1539
  %1648 = vst.msk [vmem:[%s5 + $0x150] sm:$0xff] %vm1285, %v1542
  %1649 = vst.msk [vmem:[%s5 + $0x158] sm:$0xff] %vm1285, %v1545
  %1650 = vst.msk [vmem:[%s5 + $0x160] sm:$0xff] %vm1285, %v1548
  %1651 = vst.msk [vmem:[%s5 + $0x168] sm:$0xff] %vm1285, %v1551
  %1652 = vst.msk [vmem:[%s5 + $0x170] sm:$0xff] %vm1285, %v1554
  %1653 = vst.msk [vmem:[%s5 + $0x178] sm:$0xff] %vm1285, %v1557
  %1654 = vst.msk [vmem:[%s5 + $0x180] sm:$0xff] %vm1285, %v1560
  %1655 = vst.msk [vmem:[%s5 + $0x188] sm:$0xff] %vm1285, %v1563
  %1656 = vst.msk [vmem:[%s5 + $0x190] sm:$0xff] %vm1285, %v1566
  %1657 = vst.msk [vmem:[%s5 + $0x198] sm:$0xff] %vm1285, %v1569
  %1658 = vst.msk [vmem:[%s5 + $0x1a0] sm:$0xff] %vm1285, %v1572
  %1659 = vst.msk [vmem:[%s5 + $0x1a8] sm:$0xff] %vm1285, %v1575
  %1660 = vst.msk [vmem:[%s5 + $0x1b0] sm:$0xff] %vm1285, %v1578
  %1661 = vst.msk [vmem:[%s5 + $0x1b8] sm:$0xff] %vm1285, %v1581
  %1662 = vst.msk [vmem:[%s5 + $0x1c0] sm:$0xff] %vm1285, %v1584
  %1663 = vst.msk [vmem:[%s5 + $0x1c8] sm:$0xff] %vm1285, %v1587
  %1664 = vst.msk [vmem:[%s5 + $0x1d0] sm:$0xff] %vm1285, %v1590
  %1665 = vst.msk [vmem:[%s5 + $0x1d8] sm:$0xff] %vm1285, %v1593
  %1666 = vst.msk [vmem:[%s5 + $0x1e0] sm:$0xff] %vm1285, %v1596
  %1667 = vst.msk [vmem:[%s5 + $0x1e8] sm:$0xff] %vm1285, %v1599
  %1668 = vst.msk [vmem:[%s5 + $0x1f0] sm:$0xff] %vm1285, %v1602
  %1669 = vst.msk [vmem:[%s5 + $0x1f8] sm:$0xff] %vm1285, %v1605
  // Predicated region
  $region14: #{_lambda_.11} parent=0 // pred_check
    _
  $region15: #{_lambda_.11} parent=0 // pred_check_branch
    %1671 = sbr.rel (0) target = $region17
  $region16: #{_lambda_.11} parent=0 // pred_region
    _
  $region17: #{_lambda_.11} parent=0 // pred_fallthru
    _
  // Predicated region
  $region18: #{_lambda_.11} parent=0 // pred_check
    _
  $region19: #{_lambda_.11} parent=0 // pred_check_branch
    %1673 = sbr.rel (0) target = $region21
  $region20: #{_lambda_.11} parent=0 // pred_region
    _
  $region21: #{_lambda_.11} parent=0 // pred_fallthru
    _
  // Predicated region
  $region22: #{_lambda_.11} parent=0 // pred_check
    _
  $region23: #{_lambda_.11} parent=0 // pred_check_branch
    %1675 = sbr.rel (0) target = $region25
  $region24: #{_lambda_.11} parent=0 // pred_region
    _
  $region25: #{_lambda_.11} parent=0 // pred_fallthru
    _
  // Predicated region
  $region26: #{_lambda_.11} parent=0 // pred_check
    _
  $region27: #{_lambda_.11} parent=0 // pred_check_branch
    %1677 = sbr.rel (0) target = $region29
  $region28: #{_lambda_.11} parent=0 // pred_region
    _
  $region29: #{_lambda_.11} parent=0 // pred_fallthru
    _
  // Predicated region
  $region30: #{_lambda_.11} parent=0 // pred_check
    _
  $region31: #{_lambda_.11} parent=0 // pred_check_branch
    %1679 = sbr.rel (0) target = $region33
  $region32: #{_lambda_.11} parent=0 // pred_region
    _
  $region33: #{_lambda_.11} parent=0 // pred_fallthru
    _
  // Predicated region
  $region34: #{_lambda_.11} parent=0 // pred_check
    _
  $region35: #{_lambda_.11} parent=0 // pred_check_branch
    %1681 = sbr.rel (0) target = $region37
  $region36: #{_lambda_.11} parent=0 // pred_region
    _
  $region37: #{_lambda_.11} parent=0 // pred_fallthru
    _

// kernel: _lambda_.17
$region0: #{_lambda_.17}
  #allocation0 [shape = 'u32[]', space=smem, size = 0x4, offset = 0x4, fixed_abs, tag = 'smem constant byte address 0x4 - core index']
  #allocation1 [shape = 'u32[144,128]{1,0:T(1,128)}', space=vmem, size = 0x12000, scoped, tag = 'internal scratch']
  %s0 = inlined_call_operand.vmem [shape: f32[16,128], index: 0, kind: input, shape index: {}]
  %s1 = inlined_call_operand.vmem [shape: f32[16,1], index: 1, kind: input, shape index: {}]
  %s2 = inlined_call_operand.vmem [shape: f32[16,1], index: 2, kind: input, shape index: {}]
  %s3 = inlined_call_operand.vmem [shape: f32[16,128], index: 3, kind: output, shape index: {}]
  %s4 = sld [smem:[#allocation0]]
  $region22: #{_lambda_.17} parent=0
    _
  %s6 = ssub.s32 1, %s4
  %s7 = scalar_select 0, %s6, %s4
  // Predicated region
  $region2: #{_lambda_.17} parent=0 // pred_check
    _
  $region3: #{_lambda_.17} parent=0 // pred_check_branch
    %9 = sbr.rel (0) target = $region5
  $region4: #{_lambda_.17} parent=0 // pred_region
    _
  $region5: #{_lambda_.17} parent=0 // pred_fallthru
    _
  // Predicated region
  $region6: #{_lambda_.17} parent=0 // pred_check
    _
  $region7: #{_lambda_.17} parent=0 // pred_check_branch
    %11 = sbr.rel (0) target = $region9
  $region8: #{_lambda_.17} parent=0 // pred_region
    _
  $region9: #{_lambda_.17} parent=0 // pred_fallthru
    _
  // Predicated region
  $region10: #{_lambda_.17} parent=0 // pred_check
    _
  $region11: #{_lambda_.17} parent=0 // pred_check_branch
    %13 = sbr.rel (0) target = $region13
  $region12: #{_lambda_.17} parent=0 // pred_region
    _
  $region13: #{_lambda_.17} parent=0 // pred_fallthru
    _
  %v14 = vld [vmem:[%s0] sm:$0xff]
  %v15 = vld [vmem:[%s0 + $0x8] sm:$0xff]
  %v16 = vld [vmem:[%s1] sm:$0xff]
  %v17 = vld [vmem:[%s1 + $0x8] sm:$0xff]
  %19 = vset.pattern.permute.xlu0 0
  %20 = vperm.xlu0 %19, %v16
  %v21 = vpop.permute.xlu0 %20
  %24 = vset.pattern.permute.xlu0 0
  %25 = vperm.xlu0 %24, %v17
  %v26 = vpop.permute.xlu0 %25
  %v28 = vmul.f32 %v14, %v21
  %v29 = vmul.f32 %v15, %v26
  %v30 = vld [vmem:[%s2] sm:$0xff]
  %v31 = vld [vmem:[%s2 + $0x8] sm:$0xff]
  %33 = vset.pattern.permute.xlu0 0
  %34 = vperm.xlu0 %33, %v30
  %v35 = vpop.permute.xlu0 %34
  %38 = vset.pattern.permute.xlu0 0
  %39 = vperm.xlu0 %38, %v31
  %v40 = vpop.permute.xlu0 %39
  %v42 = vadd.f32 %v28, %v35
  %v43 = vadd.f32 %v29, %v40
  %v44 = vmax.f32 %v42, 0.0
  %v45 = vmax.f32 %v43, 0.0
  %46 = vst [vmem:[%s3] sm:$0xff] %v44
  %47 = vst [vmem:[%s3 + $0x8] sm:$0xff] %v45
  // Predicated region
  $region14: #{_lambda_.17} parent=0 // pred_check
    _
  $region15: #{_lambda_.17} parent=0 // pred_check_branch
    %49 = sbr.rel (0) target = $region17
  $region16: #{_lambda_.17} parent=0 // pred_region
    _
  $region17: #{_lambda_.17} parent=0 // pred_fallthru
    _
  // Predicated region
  $region18: #{_lambda_.17} parent=0 // pred_check
    _
  $region19: #{_lambda_.17} parent=0 // pred_check_branch
    %51 = sbr.rel (0) target = $region21
  $region20: #{_lambda_.17} parent=0 // pred_region
    _
  $region21: #{_lambda_.17} parent=0 // pred_fallthru
    _

// kernel: _lambda_.18
$region0: #{_lambda_.18}
  #allocation0 [shape = 'u32[]', space=smem, size = 0x4, offset = 0x4, fixed_abs, tag = 'smem constant byte address 0x4 - core index']
  #allocation1 [shape = 'u32[144,128]{1,0:T(1,128)}', space=vmem, size = 0x12000, scoped, tag = 'internal scratch']
  %s0 = inlined_call_operand.vmem [shape: bf16[4,64], index: 0, kind: input, shape index: {}]
  %s1 = inlined_call_operand.vmem [shape: bf16[64,128], index: 1, kind: input, shape index: {}]
  %s2 = inlined_call_operand.vmem [shape: f32[4,1], index: 2, kind: input, shape index: {}]
  %s3 = inlined_call_operand.vmem [shape: f32[4,128], index: 3, kind: output, shape index: {}]
  %s4 = sld [smem:[#allocation0]]
  $region22: #{_lambda_.18} parent=0
    _
  %s6 = ssub.s32 1, %s4
  %s7 = scalar_select 0, %s6, %s4
  // Predicated region
  $region2: #{_lambda_.18} parent=0 // pred_check
    _
  $region3: #{_lambda_.18} parent=0 // pred_check_branch
    %9 = sbr.rel (0) target = $region5
  $region4: #{_lambda_.18} parent=0 // pred_region
    _
  $region5: #{_lambda_.18} parent=0 // pred_fallthru
    _
  // Predicated region
  $region6: #{_lambda_.18} parent=0 // pred_check
    _
  $region7: #{_lambda_.18} parent=0 // pred_check_branch
    %11 = sbr.rel (0) target = $region9
  $region8: #{_lambda_.18} parent=0 // pred_region
    _
  $region9: #{_lambda_.18} parent=0 // pred_fallthru
    _
  // Predicated region
  $region10: #{_lambda_.18} parent=0 // pred_check
    _
  $region11: #{_lambda_.18} parent=0 // pred_check_branch
    %13 = sbr.rel (0) target = $region13
  $region12: #{_lambda_.18} parent=0 // pred_region
    _
  $region13: #{_lambda_.18} parent=0 // pred_fallthru
    _
  %v15 = vld [vmem:[%s0] sm:$0x3]
  %v16 = vld [vmem:[%s1] sm:$0xf]
  %v17 = vld [vmem:[%s1 + $0x4] sm:$0xf]
  %v18 = vld [vmem:[%s1 + $0x8] sm:$0xf]
  %v19 = vld [vmem:[%s1 + $0xc] sm:$0xf]
  %v20 = vld [vmem:[%s1 + $0x10] sm:$0xf]
  %v21 = vld [vmem:[%s1 + $0x14] sm:$0xf]
  %v22 = vld [vmem:[%s1 + $0x18] sm:$0xf]
  %v23 = vld [vmem:[%s1 + $0x1c] sm:$0xf]
  %v24 = vld [vmem:[%s2] sm:$0xf]
  %26 = vset.pattern.permute.xlu0 0
  %27 = vperm.xlu0 %26, %v24
  %v28 = vpop.permute.xlu0 %27
  %v38 = vunpack.c.l.b16 %v16
  %v39 = vunpack.c.l.b16 %v17
  %v40 = vunpack.c.l.b16 %v18
  %v41 = vunpack.c.l.b16 %v19
  %v42 = vunpack.c.l.b16 %v20
  %v43 = vunpack.c.l.b16 %v21
  %v44 = vunpack.c.l.b16 %v22
  %v45 = vunpack.c.l.b16 %v23
  %v46 = vpack.c.b16 %v39, %v38
  %v47 = vpack.c.b16 %v41, %v40
  %v48 = vpack.c.b16 %v43, %v42
  %v49 = vpack.c.b16 %v45, %v44
  %vm54 = vcmask 523264
  %v56 = vsel %vm54, %v15, 0
  %58 = vmatprep.subr.bf16.mxu0 0
  %59 = vmatpush1.bf16.msra.mxu0 %v46
  %60 = vmatprep.subr.bf16.mxu0 0
  %61 = vmatpush1.bf16.msra.mxu0 %v47
  %62 = vmatprep.subr.bf16.mxu0 0
  %63 = vmatpush1.bf16.msra.mxu0 %v48
  %64 = vmatprep.subr.bf16.mxu0 0
  %65 = vmatpush1.bf16.msra.mxu0 %v49
  %66 = vmatprep.subr.bf16.mxu0 0
  %67 = vmatpush1.bf16.msra.mxu0 0
  %68 = vmatprep.subr.bf16.mxu0 0
  %69 = vmatpush1.bf16.msra.mxu0 0
  %70 = vmatprep.subr.bf16.mxu0 0
  %71 = vmatpush1.bf16.msra.mxu0 0
  %72 = vmatprep.subr.bf16.mxu0 0
  %73 = vmatpush1.bf16.msra.mxu0 0
  %74 = vmatprep.subr.bf16.mxu0 0
  %75 = vmatpush1.bf16.msra.mxu0 0
  %76 = vmatprep.subr.bf16.mxu0 0
  %77 = vmatpush1.bf16.msra.mxu0 0
  %78 = vmatprep.subr.bf16.mxu0 0
  %79 = vmatpush1.bf16.msra.mxu0 0
  %80 = vmatprep.subr.bf16.mxu0 0
  %81 = vmatpush1.bf16.msra.mxu0 0
  %82 = vmatprep.subr.bf16.mxu0 0
  %83 = vmatpush1.bf16.msra.mxu0 0
  %84 = vmatprep.subr.bf16.mxu0 0
  %85 = vmatpush1.bf16.msra.mxu0 0
  %86 = vmatprep.subr.bf16.mxu0 0
  %87 = vmatpush1.bf16.msra.mxu0 0
  %88 = vmatprep.subr.bf16.mxu0 0
  %89 = vmatpush1.bf16.msra.mxu0 0
  %90 = vmatprep.mubr.bf16.mxu0 0
  %91 = vmatmul.mubr.bf16.gmra.mrb[0].mxu0 %v56
  %v92 = vpop.f32.mrb[0].mxu0
  %v93 = vadd.f32 %v28, %v92
  %v94 = vpop.f32.mrb[0].mxu0
  %v95 = vpop.f32.mrb[0].mxu0
  %v96 = vpop.f32.mrb[0].mxu0
  %97 = vdwg.mxu0
  %v98 = vtanh.pop %v93
  %99 = vst [vmem:[%s3] sm:$0xf] %v98
  // Predicated region
  $region14: #{_lambda_.18} parent=0 // pred_check
    _
  $region15: #{_lambda_.18} parent=0 // pred_check_branch
    %101 = sbr.rel (0) target = $region17
  $region16: #{_lambda_.18} parent=0 // pred_region
    _
  $region17: #{_lambda_.18} parent=0 // pred_fallthru
    _
  // Predicated region
  $region18: #{_lambda_.18} parent=0 // pred_check
    _
  $region19: #{_lambda_.18} parent=0 // pred_check_branch
    %103 = sbr.rel (0) target = $region21
  $region20: #{_lambda_.18} parent=0 // pred_region
    _
  $region21: #{_lambda_.18} parent=0 // pred_fallthru
    _

</llo_original>
